<compile_context>
chip_gen: v6e
topology: v6e:2x2x1
jax: 0.10.0
libtpu: 0.0.40
codegen_flags: <defaults>
</compile_context>

<pallas_src>
import functools
import math

import jax
import jax.numpy as jnp
from jax import lax
from jax.experimental import pallas as pl
from jax.experimental.pallas import tpu as pltpu


def _mha_kernel(q_ref, k_ref, v_ref, wq_ref, wk_ref, wv_ref, mask_ref, o_ref,
                *, heads_per_step, head_dim, seq_len):
    s_pad = q_ref.shape[1]

    q = q_ref[0]          # (S_pad, D) bf16
    k = k_ref[0]          # (S_pad, D) bf16
    v = v_ref[0]          # (S_pad, D) bf16

    # Fused projections across all heads of this group: (S_pad, D) @ (D, hpg*hd),
    # bf16 MXU inputs, f32 accumulation.
    qh = jnp.dot(q, wq_ref[...], preferred_element_type=jnp.float32)
    kh = jnp.dot(k, wk_ref[...], preferred_element_type=jnp.float32)
    vh = jnp.dot(v, wv_ref[...], preferred_element_type=jnp.float32)

    # Apply 1/sqrt(head_dim) once to the projected Q slab (not per score tile).
    qh = qh * (1.0 / math.sqrt(head_dim))

    # Additive bias = user mask (zero-padded in wrapper) + in-kernel key-padding mask
    # built from a 2-D iota (no O(S^2) pad-bias array streamed from HBM).
    col = lax.broadcasted_iota(jnp.int32, (s_pad, s_pad), 1)
    bias = mask_ref[...] + jnp.where(col < seq_len, 0.0, -1e30).astype(jnp.float32)

    for h in range(heads_per_step):             # static unrolled loop over heads in group
        lo = h * head_dim
        qh_h = qh[:, lo:lo + head_dim]          # (S_pad, hd) static lane slices, f32
        kh_h = kh[:, lo:lo + head_dim]
        vh_h = vh[:, lo:lo + head_dim]

        # scores = qh_h @ kh_h^T via dot_general contracting on head_dim (no relayout).
        s = lax.dot_general(qh_h, kh_h, (((1,), (1,)), ((), ())),
                            preferred_element_type=jnp.float32)
        s = s + bias

        # Numerically stable softmax; kept entirely in f32; exact normalization.
        s = s - jnp.max(s, axis=-1, keepdims=True)
        p = jnp.exp(s)
        p = p / jnp.sum(p, axis=-1, keepdims=True)

        # Per-head writeback into the output's lane slice as soon as PV is done.
        pv = jnp.dot(p, vh_h, preferred_element_type=jnp.float32)
        o_ref[0, :, lo:lo + head_dim] = pv.astype(o_ref.dtype)


def _default_head_groups(num_heads, head_dim):
    # 2 groups: weight DMA for group g+1 overlaps compute of group g even at B == 1, and
    # the "parallel" group axis maps onto v7x's two TensorCores. Fall back to 1 group
    # unless the per-group output width stays a multiple of 128 lanes (lane-dense store).
    if num_heads % 2 == 0 and ((num_heads // 2) * head_dim) % 128 == 0:
        return 2
    return 1


def multi_head_attention(q, k, v, mask, wq, wk, wv, num_heads,
                         head_groups=None, stream_dtype=jnp.bfloat16):
    B, S, D = q.shape
    out_dim = wq.shape[0]
    assert out_dim % num_heads == 0
    head_dim = out_dim // num_heads

    if head_groups is None:
        head_groups = _default_head_groups(num_heads, head_dim)
    # Guard: per-group output width must stay a multiple of 128 lanes.
    if num_heads % head_groups != 0 or ((num_heads // head_groups) * head_dim) % 128 != 0:
        head_groups = 1
    heads_per_step = num_heads // head_groups
    cols = heads_per_step * head_dim

    # Pad sequence length to a sublane multiple of 8.
    S_pad = ((S + 7) // 8) * 8

    def pad_seq(x):
        return jnp.pad(x, ((0, 0), (0, S_pad - S), (0, 0))).astype(stream_dtype)

    qp, kp, vp = pad_seq(q), pad_seq(k), pad_seq(v)

    # Pre-transpose weights to (in, out) so the kernel does x @ w with no in-kernel .T;
    # stream them (and q/k/v) as bf16 — matmuls accumulate in f32 inside the kernel.
    wq_t = wq.T.astype(stream_dtype)
    wk_t = wk.T.astype(stream_dtype)
    wv_t = wv.T.astype(stream_dtype)

    # User mask (added to logits, as in the torch module), zero-padded; the key-padding
    # part of the bias is generated in-kernel from an iota.
    m2d = jnp.broadcast_to(mask.astype(jnp.float32)[0, 0], (S, S))
    mask_pad = jnp.pad(m2d, ((0, S_pad - S), (0, S_pad - S)))

    # Advisory cost estimate for XLA scheduling.
    flops = 2 * B * S_pad * D * out_dim * 3 + 2 * B * num_heads * S_pad * S_pad * head_dim * 2
    bytes_accessed = (2 * (3 * B * S_pad * D + 3 * D * out_dim)      # bf16 streams
                      + 4 * (S_pad * S_pad + B * S_pad * out_dim))   # f32 mask + output
    cost = pl.CostEstimate(flops=flops,
                           transcendentals=B * num_heads * S_pad * S_pad,
                           bytes_accessed=bytes_accessed)

    kernel = functools.partial(_mha_kernel,
                               heads_per_step=heads_per_step,
                               head_dim=head_dim,
                               seq_len=S)

    # Grid: (head_groups, batch) with batch INNERMOST so the weight block index (0, g)
    # is constant across consecutive steps (weights stay VMEM-resident over the batch);
    # q/k/v and mask block indices are also invariant across the group axis at B == 1.
    qkv_spec = pl.BlockSpec((1, S_pad, D), lambda g, b: (b, 0, 0))
    w_spec = pl.BlockSpec((D, cols), lambda g, b: (0, g))
    mask_spec = pl.BlockSpec((S_pad, S_pad), lambda g, b: (0, 0))
    out_spec = pl.BlockSpec((1, S_pad, cols), lambda g, b: (b, 0, g))

    out = pl.pallas_call(
        kernel,
        out_shape=jax.ShapeDtypeStruct((B, S_pad, out_dim), jnp.float32),
        grid=(head_groups, B),
        in_specs=[qkv_spec, qkv_spec, qkv_spec, w_spec, w_spec, w_spec, mask_spec],
        out_specs=out_spec,
        compiler_params=pltpu.CompilerParams(
            dimension_semantics=("parallel", "arbitrary"),
            vmem_limit_bytes=32 * 1024 * 1024),   # explicit, fits v7x's 64 MiB/TC easily
        cost_estimate=cost,
    )(qp, kp, vp, wq_t, wk_t, wv_t, mask_pad)

    # Lane-dense (B, S_pad, H*hd) slab -> torch layout (B, H, S, hd); drop padded rows.
    out = out[:, :S, :].reshape(B, S, num_heads, head_dim).transpose(0, 2, 1, 3)
    return out


def _reference(q, k, v, mask, wq, wk, wv, num_heads, cast_inputs_to=None):
    # Pure-JAX reference of the same math (torch module semantics), evaluated at
    # Precision.HIGHEST so the comparison is not affected by XLA's default bf16 matmul
    # pass for f32 on TPU. Optionally rounds inputs to `cast_inputs_to` first to model
    # the kernel's bf16 input streaming.
    if cast_inputs_to is not None:
        q, k, v, wq, wk, wv = (x.astype(cast_inputs_to).astype(jnp.float32)
                               for x in (q, k, v, wq, wk, wv))
    B, S, D = q.shape
    hd = wq.shape[0] // num_heads
    hp = lax.Precision.HIGHEST

    def proj(x, w):
        y = jnp.dot(x, w.T, precision=hp)
        return y.reshape(B, S, num_heads, hd).transpose(0, 2, 1, 3)

    qh, kh, vh = proj(q, wq), proj(k, wk), proj(v, wv)
    scores = jnp.einsum("bhqe,bhke->bhqk", qh, kh, precision=hp) / math.sqrt(hd)
    scores = scores + mask.astype(jnp.float32)
    p = jax.nn.softmax(scores, axis=-1)
    return jnp.einsum("bhqk,bhke->bhqe", p, vh, precision=hp)


if __name__ == "__main__":
    d_model = 512
    num_heads = 8
    head_dim = d_model // num_heads
    B, S = 1, 20

    key = jax.random.PRNGKey(0)
    kq, kk, kv, kwq, kwk, kwv = jax.random.split(key, 6)

    q = jax.random.normal(kq, (B, S, d_model), jnp.float32)
    k = jax.random.normal(kk, (B, S, d_model), jnp.float32)
    v = jax.random.normal(kv, (B, S, d_model), jnp.float32)
    # torch.ones(...).bool() promoted and added -> +1.0 everywhere (a uniform additive
    # constant; it cancels in softmax, kept for semantic fidelity).
    mask = jnp.ones((1, 1, S, S), jnp.float32)

    # Deterministic Linear-style weight init (scaled normal), PyTorch (out, in) layout.
    w_scale = 1.0 / math.sqrt(d_model)
    Wq = jax.random.normal(kwq, (d_model, d_model), jnp.float32) * w_scale
    Wk = jax.random.normal(kwk, (d_model, d_model), jnp.float32) * w_scale
    Wv = jax.random.normal(kwv, (d_model, d_model), jnp.float32) * w_scale

    out = multi_head_attention(q, k, v, mask, Wq, Wk, Wv, num_heads)
    out = jax.block_until_ready(out)
    assert out.shape == (B, num_heads, S, head_dim), out.shape

    # Primary check: reference with the same bf16 input rounding as the kernel's streams
    # (f32 math at HIGHEST precision) -> only accumulation-order / matmul-pass noise left.
    ref_bf = _reference(q, k, v, mask, Wq, Wk, Wv, num_heads, cast_inputs_to=jnp.bfloat16)
    err_bf = float(jnp.max(jnp.abs(out - ref_bf)))
    assert jnp.allclose(out, ref_bf, rtol=3e-2, atol=3e-2), \
        f"mismatch vs bf16-input reference (max abs err {err_bf})"

    # Secondary check: full-f32 reference; tolerance covers the bf16 input streaming.
    ref32 = _reference(q, k, v, mask, Wq, Wk, Wv, num_heads)
    err32 = float(jnp.max(jnp.abs(out - ref32)))
    assert jnp.allclose(out, ref32, rtol=5e-2, atol=5e-2), \
        f"mismatch vs f32 reference (max abs err {err32})"

    print("KERNEL_OK")
</pallas_src>

<mosaic_0001>
module attributes {stable_mosaic.version = 11 : i64} {
  func.func @_mha_kernel(%arg0: i32, %arg1: i32, %arg2: memref<1x24x512xbf16, #tpu.memory_space<vmem>>, %arg3: memref<1x24x512xbf16, #tpu.memory_space<vmem>>, %arg4: memref<1x24x512xbf16, #tpu.memory_space<vmem>>, %arg5: memref<512x256xbf16, #tpu.memory_space<vmem>>, %arg6: memref<512x256xbf16, #tpu.memory_space<vmem>>, %arg7: memref<512x256xbf16, #tpu.memory_space<vmem>>, %arg8: memref<24x24xf32, #tpu.memory_space<vmem>>, %arg9: memref<1x24x256xf32, #tpu.memory_space<vmem>>) attributes {dimension_semantics = [#tpu.dimension_semantics<parallel>, #tpu.dimension_semantics<arbitrary>], iteration_bounds = array<i64: 2, 1>, scalar_prefetch = 0 : i64, scratch_operands = 0 : i64, tpu.core_type = #tpu.core_type<tc>, window_params = [{transform_indices = @transform_0, window_bounds = array<i64: 1, 24, 512>}, {transform_indices = @transform_1, window_bounds = array<i64: 1, 24, 512>}, {transform_indices = @transform_2, window_bounds = array<i64: 1, 24, 512>}, {transform_indices = @transform_3, window_bounds = array<i64: 512, 256>}, {transform_indices = @transform_4, window_bounds = array<i64: 512, 256>}, {transform_indices = @transform_5, window_bounds = array<i64: 512, 256>}, {pipeline_mode = #tpu.pipeline_mode<synchronous>, transform_indices = @transform_6, window_bounds = array<i64: 24, 24>}, {transform_indices = @transform_7, window_bounds = array<i64: 1, 24, 256>}]} {
    %c0 = arith.constant 0 : index
    %c0_0 = arith.constant 0 : index
    %c0_1 = arith.constant 0 : index
    %0 = vector.load %arg2[%c0, %c0_0, %c0_1] : memref<1x24x512xbf16, #tpu.memory_space<vmem>>, vector<1x24x512xbf16>
    %1 = vector.shape_cast %0 : vector<1x24x512xbf16> to vector<24x512xbf16>
    %c0_2 = arith.constant 0 : index
    %c0_3 = arith.constant 0 : index
    %c0_4 = arith.constant 0 : index
    %2 = vector.load %arg3[%c0_2, %c0_3, %c0_4] : memref<1x24x512xbf16, #tpu.memory_space<vmem>>, vector<1x24x512xbf16>
    %3 = vector.shape_cast %2 : vector<1x24x512xbf16> to vector<24x512xbf16>
    %c0_5 = arith.constant 0 : index
    %c0_6 = arith.constant 0 : index
    %c0_7 = arith.constant 0 : index
    %4 = vector.load %arg4[%c0_5, %c0_6, %c0_7] : memref<1x24x512xbf16, #tpu.memory_space<vmem>>, vector<1x24x512xbf16>
    %5 = vector.shape_cast %4 : vector<1x24x512xbf16> to vector<24x512xbf16>
    %c0_8 = arith.constant 0 : index
    %c0_9 = arith.constant 0 : index
    %6 = vector.load %arg5[%c0_8, %c0_9] : memref<512x256xbf16, #tpu.memory_space<vmem>>, vector<512x256xbf16>
    %cst = arith.constant dense<0.000000e+00> : vector<24x256xf32>
    %7 = tpu.matmul %1, %6, %cst {dimension_numbers = #tpu.dot_dimension_numbers<[1], [0], [0], [1], [0, 0, 1, 1], [], []>} : vector<24x512xbf16>, vector<512x256xbf16>, vector<24x256xf32> -> vector<24x256xf32>
    %c0_10 = arith.constant 0 : index
    %c0_11 = arith.constant 0 : index
    %8 = vector.load %arg6[%c0_10, %c0_11] : memref<512x256xbf16, #tpu.memory_space<vmem>>, vector<512x256xbf16>
    %cst_12 = arith.constant dense<0.000000e+00> : vector<24x256xf32>
    %9 = tpu.matmul %3, %8, %cst_12 {dimension_numbers = #tpu.dot_dimension_numbers<[1], [0], [0], [1], [0, 0, 1, 1], [], []>} : vector<24x512xbf16>, vector<512x256xbf16>, vector<24x256xf32> -> vector<24x256xf32>
    %c0_13 = arith.constant 0 : index
    %c0_14 = arith.constant 0 : index
    %10 = vector.load %arg7[%c0_13, %c0_14] : memref<512x256xbf16, #tpu.memory_space<vmem>>, vector<512x256xbf16>
    %cst_15 = arith.constant dense<0.000000e+00> : vector<24x256xf32>
    %11 = tpu.matmul %5, %10, %cst_15 {dimension_numbers = #tpu.dot_dimension_numbers<[1], [0], [0], [1], [0, 0, 1, 1], [], []>} : vector<24x512xbf16>, vector<512x256xbf16>, vector<24x256xf32> -> vector<24x256xf32>
    %cst_16 = arith.constant 1.250000e-01 : f32
    %12 = vector.broadcast %cst_16 : f32 to vector<24x256xf32>
    %13 = arith.mulf %7, %12 : vector<24x256xf32>
    %14 = tpu.iota {dimensions = array<i32: 1>} : vector<24x24xi32>
    %c0_17 = arith.constant 0 : index
    %c0_18 = arith.constant 0 : index
    %15 = vector.load %arg8[%c0_17, %c0_18] : memref<24x24xf32, #tpu.memory_space<vmem>>, vector<24x24xf32>
    %c20_i32 = arith.constant 20 : i32
    %16 = vector.broadcast %c20_i32 : i32 to vector<24x24xi32>
    %17 = arith.cmpi slt, %14, %16 : vector<24x24xi32>
    %cst_19 = arith.constant 0.000000e+00 : f32
    %cst_20 = arith.constant -1.000000e+30 : f32
    %18 = vector.broadcast %cst_19 : f32 to vector<24x24xf32>
    %19 = vector.broadcast %cst_20 : f32 to vector<24x24xf32>
    %20 = arith.select %17, %18, %19 : vector<24x24xi1>, vector<24x24xf32>
    %21 = arith.addf %15, %20 : vector<24x24xf32>
    %22 = vector.extract_strided_slice %13 {offsets = [0, 0], sizes = [24, 64], strides = [1, 1]} : vector<24x256xf32> to vector<24x64xf32>
    %23 = vector.extract_strided_slice %9 {offsets = [0, 0], sizes = [24, 64], strides = [1, 1]} : vector<24x256xf32> to vector<24x64xf32>
    %24 = vector.extract_strided_slice %11 {offsets = [0, 0], sizes = [24, 64], strides = [1, 1]} : vector<24x256xf32> to vector<24x64xf32>
    %cst_21 = arith.constant dense<0.000000e+00> : vector<24x24xf32>
    %25 = tpu.matmul %22, %23, %cst_21 {dimension_numbers = #tpu.dot_dimension_numbers<[1], [1], [0], [0], [0, 0, 1, 0], [], []>} : vector<24x64xf32>, vector<24x64xf32>, vector<24x24xf32> -> vector<24x24xf32>
    %26 = arith.addf %25, %21 : vector<24x24xf32>
    %cst_22 = arith.constant dense<0xFF800000> : vector<24xf32>
    %27 = vector.multi_reduction <maximumf>, %26, %cst_22 [1] : vector<24x24xf32> to vector<24xf32>
    %28 = vector.shape_cast %27 : vector<24xf32> to vector<24x1xf32>
    %29 = vector.broadcast %28 : vector<24x1xf32> to vector<24x24xf32>
    %30 = arith.subf %26, %29 : vector<24x24xf32>
    %31 = math.exp %30 : vector<24x24xf32>
    %cst_23 = arith.constant dense<0.000000e+00> : vector<24xf32>
    %32 = vector.multi_reduction <add>, %31, %cst_23 [1] : vector<24x24xf32> to vector<24xf32>
    %33 = vector.shape_cast %32 : vector<24xf32> to vector<24x1xf32>
    %34 = vector.broadcast %33 : vector<24x1xf32> to vector<24x24xf32>
    %35 = arith.divf %31, %34 : vector<24x24xf32>
    %cst_24 = arith.constant dense<0.000000e+00> : vector<24x64xf32>
    %36 = tpu.matmul %35, %24, %cst_24 {dimension_numbers = #tpu.dot_dimension_numbers<[1], [0], [0], [1], [0, 0, 1, 1], [], []>} : vector<24x24xf32>, vector<24x64xf32>, vector<24x64xf32> -> vector<24x64xf32>
    %c0_25 = arith.constant 0 : index
    %c0_26 = arith.constant 0 : index
    %c0_27 = arith.constant 0 : index
    %37 = vector.load %arg9[%c0_25, %c0_26, %c0_27] : memref<1x24x256xf32, #tpu.memory_space<vmem>>, vector<1x24x64xf32>
    %38 = vector.shape_cast %37 : vector<1x24x64xf32> to vector<24x64xf32>
    %39 = vector.shape_cast %36 : vector<24x64xf32> to vector<1x24x64xf32>
    tpu.vector_store %arg9[%c0_25, %c0_26, %c0_27], %39 {strides = array<i32>} : memref<1x24x256xf32, #tpu.memory_space<vmem>>, vector<1x24x64xf32>,
    %40 = vector.extract_strided_slice %13 {offsets = [0, 64], sizes = [24, 64], strides = [1, 1]} : vector<24x256xf32> to vector<24x64xf32>
    %41 = vector.extract_strided_slice %9 {offsets = [0, 64], sizes = [24, 64], strides = [1, 1]} : vector<24x256xf32> to vector<24x64xf32>
    %42 = vector.extract_strided_slice %11 {offsets = [0, 64], sizes = [24, 64], strides = [1, 1]} : vector<24x256xf32> to vector<24x64xf32>
    %cst_28 = arith.constant dense<0.000000e+00> : vector<24x24xf32>
    %43 = tpu.matmul %40, %41, %cst_28 {dimension_numbers = #tpu.dot_dimension_numbers<[1], [1], [0], [0], [0, 0, 1, 0], [], []>} : vector<24x64xf32>, vector<24x64xf32>, vector<24x24xf32> -> vector<24x24xf32>
    %44 = arith.addf %43, %21 : vector<24x24xf32>
    %cst_29 = arith.constant dense<0xFF800000> : vector<24xf32>
    %45 = vector.multi_reduction <maximumf>, %44, %cst_29 [1] : vector<24x24xf32> to vector<24xf32>
    %46 = vector.shape_cast %45 : vector<24xf32> to vector<24x1xf32>
    %47 = vector.broadcast %46 : vector<24x1xf32> to vector<24x24xf32>
    %48 = arith.subf %44, %47 : vector<24x24xf32>
    %49 = math.exp %48 : vector<24x24xf32>
    %cst_30 = arith.constant dense<0.000000e+00> : vector<24xf32>
    %50 = vector.multi_reduction <add>, %49, %cst_30 [1] : vector<24x24xf32> to vector<24xf32>
    %51 = vector.shape_cast %50 : vector<24xf32> to vector<24x1xf32>
    %52 = vector.broadcast %51 : vector<24x1xf32> to vector<24x24xf32>
    %53 = arith.divf %49, %52 : vector<24x24xf32>
    %cst_31 = arith.constant dense<0.000000e+00> : vector<24x64xf32>
    %54 = tpu.matmul %53, %42, %cst_31 {dimension_numbers = #tpu.dot_dimension_numbers<[1], [0], [0], [1], [0, 0, 1, 1], [], []>} : vector<24x24xf32>, vector<24x64xf32>, vector<24x64xf32> -> vector<24x64xf32>
    %c0_32 = arith.constant 0 : index
    %c0_33 = arith.constant 0 : index
    %c64 = arith.constant 64 : index
    %55 = vector.load %arg9[%c0_32, %c0_33, %c64] : memref<1x24x256xf32, #tpu.memory_space<vmem>>, vector<1x24x64xf32>
    %56 = vector.shape_cast %55 : vector<1x24x64xf32> to vector<24x64xf32>
    %57 = vector.shape_cast %54 : vector<24x64xf32> to vector<1x24x64xf32>
    tpu.vector_store %arg9[%c0_32, %c0_33, %c64], %57 {strides = array<i32>} : memref<1x24x256xf32, #tpu.memory_space<vmem>>, vector<1x24x64xf32>,
    %58 = vector.extract_strided_slice %13 {offsets = [0, 128], sizes = [24, 64], strides = [1, 1]} : vector<24x256xf32> to vector<24x64xf32>
    %59 = vector.extract_strided_slice %9 {offsets = [0, 128], sizes = [24, 64], strides = [1, 1]} : vector<24x256xf32> to vector<24x64xf32>
    %60 = vector.extract_strided_slice %11 {offsets = [0, 128], sizes = [24, 64], strides = [1, 1]} : vector<24x256xf32> to vector<24x64xf32>
    %cst_34 = arith.constant dense<0.000000e+00> : vector<24x24xf32>
    %61 = tpu.matmul %58, %59, %cst_34 {dimension_numbers = #tpu.dot_dimension_numbers<[1], [1], [0], [0], [0, 0, 1, 0], [], []>} : vector<24x64xf32>, vector<24x64xf32>, vector<24x24xf32> -> vector<24x24xf32>
    %62 = arith.addf %61, %21 : vector<24x24xf32>
    %cst_35 = arith.constant dense<0xFF800000> : vector<24xf32>
    %63 = vector.multi_reduction <maximumf>, %62, %cst_35 [1] : vector<24x24xf32> to vector<24xf32>
    %64 = vector.shape_cast %63 : vector<24xf32> to vector<24x1xf32>
    %65 = vector.broadcast %64 : vector<24x1xf32> to vector<24x24xf32>
    %66 = arith.subf %62, %65 : vector<24x24xf32>
    %67 = math.exp %66 : vector<24x24xf32>
    %cst_36 = arith.constant dense<0.000000e+00> : vector<24xf32>
    %68 = vector.multi_reduction <add>, %67, %cst_36 [1] : vector<24x24xf32> to vector<24xf32>
    %69 = vector.shape_cast %68 : vector<24xf32> to vector<24x1xf32>
    %70 = vector.broadcast %69 : vector<24x1xf32> to vector<24x24xf32>
    %71 = arith.divf %67, %70 : vector<24x24xf32>
    %cst_37 = arith.constant dense<0.000000e+00> : vector<24x64xf32>
    %72 = tpu.matmul %71, %60, %cst_37 {dimension_numbers = #tpu.dot_dimension_numbers<[1], [0], [0], [1], [0, 0, 1, 1], [], []>} : vector<24x24xf32>, vector<24x64xf32>, vector<24x64xf32> -> vector<24x64xf32>
    %c0_38 = arith.constant 0 : index
    %c0_39 = arith.constant 0 : index
    %c128 = arith.constant 128 : index
    %73 = vector.load %arg9[%c0_38, %c0_39, %c128] : memref<1x24x256xf32, #tpu.memory_space<vmem>>, vector<1x24x64xf32>
    %74 = vector.shape_cast %73 : vector<1x24x64xf32> to vector<24x64xf32>
    %75 = vector.shape_cast %72 : vector<24x64xf32> to vector<1x24x64xf32>
    tpu.vector_store %arg9[%c0_38, %c0_39, %c128], %75 {strides = array<i32>} : memref<1x24x256xf32, #tpu.memory_space<vmem>>, vector<1x24x64xf32>,
    %76 = vector.extract_strided_slice %13 {offsets = [0, 192], sizes = [24, 64], strides = [1, 1]} : vector<24x256xf32> to vector<24x64xf32>
    %77 = vector.extract_strided_slice %9 {offsets = [0, 192], sizes = [24, 64], strides = [1, 1]} : vector<24x256xf32> to vector<24x64xf32>
    %78 = vector.extract_strided_slice %11 {offsets = [0, 192], sizes = [24, 64], strides = [1, 1]} : vector<24x256xf32> to vector<24x64xf32>
    %cst_40 = arith.constant dense<0.000000e+00> : vector<24x24xf32>
    %79 = tpu.matmul %76, %77, %cst_40 {dimension_numbers = #tpu.dot_dimension_numbers<[1], [1], [0], [0], [0, 0, 1, 0], [], []>} : vector<24x64xf32>, vector<24x64xf32>, vector<24x24xf32> -> vector<24x24xf32>
    %80 = arith.addf %79, %21 : vector<24x24xf32>
    %cst_41 = arith.constant dense<0xFF800000> : vector<24xf32>
    %81 = vector.multi_reduction <maximumf>, %80, %cst_41 [1] : vector<24x24xf32> to vector<24xf32>
    %82 = vector.shape_cast %81 : vector<24xf32> to vector<24x1xf32>
    %83 = vector.broadcast %82 : vector<24x1xf32> to vector<24x24xf32>
    %84 = arith.subf %80, %83 : vector<24x24xf32>
    %85 = math.exp %84 : vector<24x24xf32>
    %cst_42 = arith.constant dense<0.000000e+00> : vector<24xf32>
    %86 = vector.multi_reduction <add>, %85, %cst_42 [1] : vector<24x24xf32> to vector<24xf32>
    %87 = vector.shape_cast %86 : vector<24xf32> to vector<24x1xf32>
    %88 = vector.broadcast %87 : vector<24x1xf32> to vector<24x24xf32>
    %89 = arith.divf %85, %88 : vector<24x24xf32>
    %cst_43 = arith.constant dense<0.000000e+00> : vector<24x64xf32>
    %90 = tpu.matmul %89, %78, %cst_43 {dimension_numbers = #tpu.dot_dimension_numbers<[1], [0], [0], [1], [0, 0, 1, 1], [], []>} : vector<24x24xf32>, vector<24x64xf32>, vector<24x64xf32> -> vector<24x64xf32>
    %c0_44 = arith.constant 0 : index
    %c0_45 = arith.constant 0 : index
    %c192 = arith.constant 192 : index
    %91 = vector.load %arg9[%c0_44, %c0_45, %c192] : memref<1x24x256xf32, #tpu.memory_space<vmem>>, vector<1x24x64xf32>
    %92 = vector.shape_cast %91 : vector<1x24x64xf32> to vector<24x64xf32>
    %93 = vector.shape_cast %90 : vector<24x64xf32> to vector<1x24x64xf32>
    tpu.vector_store %arg9[%c0_44, %c0_45, %c192], %93 {strides = array<i32>} : memref<1x24x256xf32, #tpu.memory_space<vmem>>, vector<1x24x64xf32>,
    return
  }
  func.func @transform_0(%arg0: i32, %arg1: i32) -> (i32, i32, i32) {
    %c0_i32 = arith.constant 0 : i32
    %c0_i32_0 = arith.constant 0 : i32
    %c0_i32_1 = arith.constant 0 : i32
    return %arg1, %c0_i32, %c0_i32_0 : i32, i32, i32
  }
  func.func @transform_1(%arg0: i32, %arg1: i32) -> (i32, i32, i32) {
    %c0_i32 = arith.constant 0 : i32
    %c0_i32_0 = arith.constant 0 : i32
    %c0_i32_1 = arith.constant 0 : i32
    return %arg1, %c0_i32, %c0_i32_0 : i32, i32, i32
  }
  func.func @transform_2(%arg0: i32, %arg1: i32) -> (i32, i32, i32) {
    %c0_i32 = arith.constant 0 : i32
    %c0_i32_0 = arith.constant 0 : i32
    %c0_i32_1 = arith.constant 0 : i32
    return %arg1, %c0_i32, %c0_i32_0 : i32, i32, i32
  }
  func.func @transform_3(%arg0: i32, %arg1: i32) -> (i32, i32) {
    %c0_i32 = arith.constant 0 : i32
    %c0_i32_0 = arith.constant 0 : i32
    return %c0_i32, %arg0 : i32, i32
  }
  func.func @transform_4(%arg0: i32, %arg1: i32) -> (i32, i32) {
    %c0_i32 = arith.constant 0 : i32
    %c0_i32_0 = arith.constant 0 : i32
    return %c0_i32, %arg0 : i32, i32
  }
  func.func @transform_5(%arg0: i32, %arg1: i32) -> (i32, i32) {
    %c0_i32 = arith.constant 0 : i32
    %c0_i32_0 = arith.constant 0 : i32
    return %c0_i32, %arg0 : i32, i32
  }
  func.func @transform_6(%arg0: i32, %arg1: i32) -> (i32, i32) {
    %c0_i32 = arith.constant 0 : i32
    %c0_i32_0 = arith.constant 0 : i32
    %c0_i32_1 = arith.constant 0 : i32
    return %c0_i32, %c0_i32_0 : i32, i32
  }
  func.func @transform_7(%arg0: i32, %arg1: i32) -> (i32, i32, i32) {
    %c0_i32 = arith.constant 0 : i32
    %c0_i32_0 = arith.constant 0 : i32
    return %arg1, %c0_i32, %arg0 : i32, i32, i32
  }
}

</mosaic_0001>

<llo_original>
// kernel: tpu_custom_call.1
$region0: #{tpu_custom_call.1}
  #allocation0 [shape = 'u32[]', space=smem, size = 0x4, offset = 0x4, fixed_abs, tag = 'smem constant byte address 0x4 - core index']
  #allocation1 [shape = 'u32[144,128]{1,0:T(1,128)}', space=vmem, size = 0x12000, scoped, tag = 'internal scratch']
  %s0 = inlined_call_operand.hbm [shape: bf16[1,24,512], index: 0, kind: input, shape index: {}]
  %s1 = inlined_call_operand.hbm [shape: bf16[1,24,512], index: 1, kind: input, shape index: {}]
  %s2 = inlined_call_operand.hbm [shape: bf16[1,24,512], index: 2, kind: input, shape index: {}]
  %s3 = inlined_call_operand.hbm [shape: bf16[512,512], index: 3, kind: input, shape index: {}]
  %s4 = inlined_call_operand.hbm [shape: bf16[512,512], index: 4, kind: input, shape index: {}]
  %s5 = inlined_call_operand.hbm [shape: bf16[512,512], index: 5, kind: input, shape index: {}]
  %s6 = inlined_call_operand.hbm [shape: f32[24,24], index: 6, kind: input, shape index: {}]
  %s7 = inlined_call_operand.hbm [shape: f32[1,24,512], index: 7, kind: output, shape index: {}]
  %s8 = sld [smem:[#allocation0]]
  $region89: #{tpu_custom_call.1} parent=0
    _
  %s10 = ssub.s32 1, %s8
  %s11 = scalar_select 0, %s10, %s8
  $region1: #{tpu_custom_call.1} parent=0
    #allocation2 [shape = 'u8[24576]{0}', space=vmem, size = 0x6000, scoped, tag = 'input window, operand 0, single buffered']
    #allocation3 [shape = 's32[2]{0}', space=sflag, size = 0x8, scoped, tag = 'scoped memory for tpu_custom_call.1']
    #allocation4 [shape = 's32[2]{0}', space=sflag, size = 0x8, scoped, tag = 'scoped memory for tpu_custom_call.1']
    #allocation5 [shape = 'u8[24576]{0}', space=vmem, size = 0x6000, scoped, tag = 'input window, operand 1, single buffered']
    #allocation6 [shape = 's32[1]{0}', space=sflag, size = 0x4, scoped, tag = 'scoped memory for tpu_custom_call.1']
    #allocation7 [shape = 'u8[24576]{0}', space=vmem, size = 0x6000, scoped, tag = 'input window, operand 2, single buffered']
    #allocation8 [shape = 'u8[524288]{0}', space=vmem, size = 0x80000, scoped, tag = 'input window, operand 3']
    #allocation9 [shape = 's32[2]{0}', space=sflag, size = 0x8, scoped, tag = 'scoped memory for tpu_custom_call.1']
    #allocation10 [shape = 'u8[524288]{0}', space=vmem, size = 0x80000, scoped, tag = 'input window, operand 4']
    #allocation11 [shape = 'u8[524288]{0}', space=vmem, size = 0x80000, scoped, tag = 'input window, operand 5']
    #allocation12 [shape = 's32[2]{0}', space=sflag, size = 0x8, scoped, tag = 'scoped memory for tpu_custom_call.1']
    #allocation13 [shape = 'u8[12288]{0}', space=vmem, size = 0x3000, scoped, tag = 'input window, operand 6, single buffered']
    #allocation14 [shape = 'u8[49152]{0}', space=vmem, size = 0xc000, scoped, tag = 'output window, operand 0']
    %12 = vsyncpa [#allocation3], 0
    %13 = vsyncpa [#allocation6], 0
    %14 = vsyncpa [#allocation9], 0
    %s15 = scalar_lea.sflag [#allocation9], 1
    %16 = vsyncpa %s15, 0
    %17 = vsyncpa [#allocation12], 0
    %s18 = scalar_lea.sflag [#allocation12], 1
    %19 = vsyncpa %s18, 0
    %20 = vsyncpa [#allocation4], 0
    %s21 = scalar_lea.sflag [#allocation4], 1
    %22 = vsyncpa %s21, 0
    loop: start=0, step=1, limit=4
    $region2: #{tpu_custom_call.1} parent=1 // loop_pre_header
      _
    $region3: #{tpu_custom_call.1} parent=1 // loop_header
      %s24 = sphi 0, %s28
      %p25 = scmp.ge.s32.totalorder %s24, 4
      %s31 = sphi 0, %s43
      %s32 = sphi 0, %s39
      %s33 = sphi 0, %s31
      %s34 = sphi 0, %s32
      %s35 = sphi 0, %s33
      %s36 = sphi 0, %s34
      %s46 = sphi 0, %s48
      %s49 = sphi 0, %s46
      %s50 = sphi 0, %s49
      %s66 = sphi 0, %s50
      %s72 = sphi 0, %s74
      %s75 = sphi 0, %s72
      %s76 = sphi 0, %s75
      %s92 = sphi 0, %s76
      %s98 = sphi 0, %s100
      %s101 = sphi 0, %s98
      %s102 = sphi 0, %s101
      %s118 = sphi 0, %s102
      %s124 = sphi 0, %s126
      %s127 = sphi 0, %s124
      %s128 = sphi 0, %s127
      %s144 = sphi 0, %s128
      %s150 = sphi 0, %s152
      %s153 = sphi 0, %s150
      %s154 = sphi 0, %s153
      %s170 = sphi 0, %s154
      %s176 = sphi 0, %s178
      %s179 = sphi 0, %s176
      %s180 = sphi 0, %s179
      %s196 = sphi 0, %s180
      %s200 = sphi 0, %s200
      %s202 = sphi 0, %s200
      %s203 = sphi 0, %s202
      %s217 = sphi 0, %s203
      %s225 = sphi 0, %s227
      %s228 = sphi 0, %s225
      %s229 = sphi 0, %s228
      %s245 = sphi 0, %s229
    $region4: #{tpu_custom_call.1} parent=1 // loop_header_branch
      %27 = sbr.rel (%p25) target = $region8
    $region5: #{tpu_custom_call.1} parent=1 // loop_body
      %s29 = ssub.s32 %s24, 1
      %s30 = ssub.s32 %s24, 2
      %s37 = sadd.s32 1, %s32
      %p38 = scmp.ge.s32.totalorder %s37, 1
      %s39 = scalar_select %p38, 0, %s37
      %s40 = sadd.s32 1, %s31
      %s41 = scalar_select %p38, %s40, %s31
      %p42 = scmp.ge.s32.totalorder %s41, 2
      %s43 = scalar_select %p42, 0, %s41
      %s44 = ssub.s32 %s32, %s39
      %p45 = scmp.eq.s32.totalorder %s44, 0
      %s47 = sadd.s32 %s46, 1
      %s48 = scalar_select %p45, %s46, %s47
      %p51 = pneg %p45
      %p52 = scmp.eq.s32.totalorder %s24, 1
      %p53 = por %p51, %p52
      %p54 = scmp.ne.s32.totalorder %s46, %s49
      %p55 = scmp.eq.s32.totalorder %s24, 0
      %p56 = por %p54, %p55
      %p57 = scmp.ne.s32.totalorder %s46, %s49
      %p58 = scmp.eq.s32.totalorder %s29, 1
      %p59 = por %p57, %p58
      %p60 = scmp.ne.s32.totalorder %s49, %s50
      %p61 = scmp.eq.s32.totalorder %s29, 0
      %p62 = por %p60, %p61
      %p63 = scmp.ne.s32.totalorder %s49, %s50
      %p64 = scmp.eq.s32.totalorder %s30, 1
      %p65 = por %p63, %p64
      %p67 = scmp.ne.s32.totalorder %s50, %s66
      %p68 = scmp.eq.s32.totalorder %s30, 0
      %p69 = por %p67, %p68
      %s70 = ssub.s32 %s32, %s39
      %p71 = scmp.eq.s32.totalorder %s70, 0
      %s73 = sadd.s32 %s72, 1
      %s74 = scalar_select %p71, %s72, %s73
      %p77 = pneg %p71
      %p78 = scmp.eq.s32.totalorder %s24, 1
      %p79 = por %p77, %p78
      %p80 = scmp.ne.s32.totalorder %s72, %s75
      %p81 = scmp.eq.s32.totalorder %s24, 0
      %p82 = por %p80, %p81
      %p83 = scmp.ne.s32.totalorder %s72, %s75
      %p84 = scmp.eq.s32.totalorder %s29, 1
      %p85 = por %p83, %p84
      %p86 = scmp.ne.s32.totalorder %s75, %s76
      %p87 = scmp.eq.s32.totalorder %s29, 0
      %p88 = por %p86, %p87
      %p89 = scmp.ne.s32.totalorder %s75, %s76
      %p90 = scmp.eq.s32.totalorder %s30, 1
      %p91 = por %p89, %p90
      %p93 = scmp.ne.s32.totalorder %s76, %s92
      %p94 = scmp.eq.s32.totalorder %s30, 0
      %p95 = por %p93, %p94
      %s96 = ssub.s32 %s32, %s39
      %p97 = scmp.eq.s32.totalorder %s96, 0
      %s99 = sadd.s32 %s98, 1
      %s100 = scalar_select %p97, %s98, %s99
      %p103 = pneg %p97
      %p104 = scmp.eq.s32.totalorder %s24, 1
      %p105 = por %p103, %p104
      %p106 = scmp.ne.s32.totalorder %s98, %s101
      %p107 = scmp.eq.s32.totalorder %s24, 0
      %p108 = por %p106, %p107
      %p109 = scmp.ne.s32.totalorder %s98, %s101
      %p110 = scmp.eq.s32.totalorder %s29, 1
      %p111 = por %p109, %p110
      %p112 = scmp.ne.s32.totalorder %s101, %s102
      %p113 = scmp.eq.s32.totalorder %s29, 0
      %p114 = por %p112, %p113
      %p115 = scmp.ne.s32.totalorder %s101, %s102
      %p116 = scmp.eq.s32.totalorder %s30, 1
      %p117 = por %p115, %p116
      %p119 = scmp.ne.s32.totalorder %s102, %s118
      %p120 = scmp.eq.s32.totalorder %s30, 0
      %p121 = por %p119, %p120
      %s122 = ssub.s32 %s31, %s43
      %p123 = scmp.eq.s32.totalorder %s122, 0
      %s125 = sadd.s32 %s124, 1
      %s126 = scalar_select %p123, %s124, %s125
      %p129 = pneg %p123
      %p130 = scmp.eq.s32.totalorder %s24, 1
      %p131 = por %p129, %p130
      %p132 = scmp.ne.s32.totalorder %s124, %s127
      %p133 = scmp.eq.s32.totalorder %s24, 0
      %p134 = por %p132, %p133
      %p135 = scmp.ne.s32.totalorder %s124, %s127
      %p136 = scmp.eq.s32.totalorder %s29, 1
      %p137 = por %p135, %p136
      %p138 = scmp.ne.s32.totalorder %s127, %s128
      %p139 = scmp.eq.s32.totalorder %s29, 0
      %p140 = por %p138, %p139
      %p141 = scmp.ne.s32.totalorder %s127, %s128
      %p142 = scmp.eq.s32.totalorder %s30, 1
      %p143 = por %p141, %p142
      %p145 = scmp.ne.s32.totalorder %s128, %s144
      %p146 = scmp.eq.s32.totalorder %s30, 0
      %p147 = por %p145, %p146
      %s148 = ssub.s32 %s31, %s43
      %p149 = scmp.eq.s32.totalorder %s148, 0
      %s151 = sadd.s32 %s150, 1
      %s152 = scalar_select %p149, %s150, %s151
      %p155 = pneg %p149
      %p156 = scmp.eq.s32.totalorder %s24, 1
      %p157 = por %p155, %p156
      %p158 = scmp.ne.s32.totalorder %s150, %s153
      %p159 = scmp.eq.s32.totalorder %s24, 0
      %p160 = por %p158, %p159
      %p161 = scmp.ne.s32.totalorder %s150, %s153
      %p162 = scmp.eq.s32.totalorder %s29, 1
      %p163 = por %p161, %p162
      %p164 = scmp.ne.s32.totalorder %s153, %s154
      %p165 = scmp.eq.s32.totalorder %s29, 0
      %p166 = por %p164, %p165
      %p167 = scmp.ne.s32.totalorder %s153, %s154
      %p168 = scmp.eq.s32.totalorder %s30, 1
      %p169 = por %p167, %p168
      %p171 = scmp.ne.s32.totalorder %s154, %s170
      %p172 = scmp.eq.s32.totalorder %s30, 0
      %p173 = por %p171, %p172
      %s174 = ssub.s32 %s31, %s43
      %p175 = scmp.eq.s32.totalorder %s174, 0
      %s177 = sadd.s32 %s176, 1
      %s178 = scalar_select %p175, %s176, %s177
      %p181 = pneg %p175
      %p182 = scmp.eq.s32.totalorder %s24, 1
      %p183 = por %p181, %p182
      %p184 = scmp.ne.s32.totalorder %s176, %s179
      %p185 = scmp.eq.s32.totalorder %s24, 0
      %p186 = por %p184, %p185
      %p187 = scmp.ne.s32.totalorder %s176, %s179
      %p188 = scmp.eq.s32.totalorder %s29, 1
      %p189 = por %p187, %p188
      %p190 = scmp.ne.s32.totalorder %s179, %s180
      %p191 = scmp.eq.s32.totalorder %s29, 0
      %p192 = por %p190, %p191
      %p193 = scmp.ne.s32.totalorder %s179, %s180
      %p194 = scmp.eq.s32.totalorder %s30, 1
      %p195 = por %p193, %p194
      %p197 = scmp.ne.s32.totalorder %s180, %s196
      %p198 = scmp.eq.s32.totalorder %s30, 0
      %p199 = por %p197, %p198
      %s201 = sadd.s32 %s200, 1
      %p204 = scmp.eq.s32.totalorder %s24, 1
      %p205 = scmp.ne.s32.totalorder %s200, %s202
      %p206 = scmp.eq.s32.totalorder %s24, 0
      %p207 = por %p205, %p206
      %p208 = scmp.ne.s32.totalorder %s200, %s202
      %p209 = scmp.eq.s32.totalorder %s29, 1
      %p210 = por %p208, %p209
      %p211 = scmp.ne.s32.totalorder %s202, %s203
      %p212 = scmp.eq.s32.totalorder %s29, 0
      %p213 = por %p211, %p212
      %p214 = scmp.ne.s32.totalorder %s202, %s203
      %p215 = scmp.eq.s32.totalorder %s30, 1
      %p216 = por %p214, %p215
      %p218 = scmp.ne.s32.totalorder %s203, %s217
      %p219 = scmp.eq.s32.totalorder %s30, 0
      %p220 = por %p218, %p219
      %s221 = ssub.s32 %s32, %s39
      %s222 = ssub.s32 %s31, %s43
      %s223 = sor.u32 %s221, %s222
      %p224 = scmp.eq.s32.totalorder %s223, 0
      %s226 = sadd.s32 %s225, 1
      %s227 = scalar_select %p224, %s225, %s226
      %p230 = pneg %p224
      %p231 = scmp.eq.s32.totalorder %s24, 1
      %p232 = por %p230, %p231
      %p233 = scmp.ne.s32.totalorder %s225, %s228
      %p234 = scmp.eq.s32.totalorder %s24, 0
      %p235 = por %p233, %p234
      %p236 = scmp.ne.s32.totalorder %s225, %s228
      %p237 = scmp.eq.s32.totalorder %s29, 1
      %p238 = por %p236, %p237
      %p239 = scmp.ne.s32.totalorder %s228, %s229
      %p240 = scmp.eq.s32.totalorder %s29, 0
      %p241 = por %p239, %p240
      %p242 = scmp.ne.s32.totalorder %s228, %s229
      %p243 = scmp.eq.s32.totalorder %s30, 1
      %p244 = por %p242, %p243
      %p246 = scmp.ne.s32.totalorder %s229, %s245
      %p247 = scmp.eq.s32.totalorder %s30, 0
      %p248 = por %p246, %p247
      %p249 = scmp.le.s32.totalorder 1, %s24
      %p250 = scmp.lt.s32.totalorder %s24, 3
      %p251 = pnand %p249, %p250
      %p252 = pneg %p251
      // Predicated region
      $region9: #{tpu_custom_call.1} parent=5 // pred_check
        _
      $region10: #{tpu_custom_call.1} parent=5 // pred_check_branch
        %254 = sbr.rel (%p251) target = $region12
      $region11: #{tpu_custom_call.1} parent=5 // pred_region
        %s255 = ssub.s32 %s24, 1
        // Predicated region
        $region13: #{tpu_custom_call.1} parent=11 // pred_check
          %p256 = pneg %p62
        $region14: #{tpu_custom_call.1} parent=11 // pred_check_branch
          %258 = sbr.rel (%p256) target = $region16
        $region15: #{tpu_custom_call.1} parent=11 // pred_region
          %s260 = ssub.s32 768, 768
          %261 = vsyncadd [#allocation3], %s260
          %s262 = smul.addr %s34, 12
          %s263 = smul.addr %s262, 64
          %s264 = scalar_lea.hbm %s0, %s263
          %s265 = sshll.u32 [#allocation2], 4
          %s266 = int_to_ptr.vmem [resolvable:$true] %s265
          %271 = dma.hbm_to_vmem [thread:$0]  %s264, 768, %s266, [#allocation3], 256, 256, 16
        $region16: #{tpu_custom_call.1} parent=11 // pred_fallthru
          _
        // Predicated region
        $region17: #{tpu_custom_call.1} parent=11 // pred_check
          %p272 = pneg %p88
        $region18: #{tpu_custom_call.1} parent=11 // pred_check_branch
          %274 = sbr.rel (%p272) target = $region20
        $region19: #{tpu_custom_call.1} parent=11 // pred_region
          %s276 = ssub.s32 768, 768
          %277 = vsyncadd [#allocation6], %s276
          %s278 = smul.addr %s34, 12
          %s279 = smul.addr %s278, 64
          %s280 = scalar_lea.hbm %s1, %s279
          %s281 = sshll.u32 [#allocation5], 4
          %s282 = int_to_ptr.vmem [resolvable:$true] %s281
          %287 = dma.hbm_to_vmem [thread:$0]  %s280, 768, %s282, [#allocation6], 256, 256, 16
        $region20: #{tpu_custom_call.1} parent=11 // pred_fallthru
          _
        // Predicated region
        $region21: #{tpu_custom_call.1} parent=11 // pred_check
          %p288 = pneg %p114
        $region22: #{tpu_custom_call.1} parent=11 // pred_check_branch
          %290 = sbr.rel (%p288) target = $region24
        $region23: #{tpu_custom_call.1} parent=11 // pred_region
          %s292 = ssub.s32 768, 768
          %293 = vsyncadd [#allocation6], %s292
          %s294 = smul.addr %s34, 12
          %s295 = smul.addr %s294, 64
          %s296 = scalar_lea.hbm %s2, %s295
          %s297 = sshll.u32 [#allocation7], 4
          %s298 = int_to_ptr.vmem [resolvable:$true] %s297
          %303 = dma.hbm_to_vmem [thread:$0]  %s296, 768, %s298, [#allocation6], 256, 256, 16
        $region24: #{tpu_custom_call.1} parent=11 // pred_fallthru
          _
        // Predicated region
        $region25: #{tpu_custom_call.1} parent=11 // pred_check
          %p304 = pneg %p213
        $region26: #{tpu_custom_call.1} parent=11 // pred_check_branch
          %306 = sbr.rel (%p304) target = $region28
        $region27: #{tpu_custom_call.1} parent=11 // pred_region
          %s308 = ssub.s32 384, 384
          %309 = vsyncadd [#allocation12], %s308
          %s310 = sshll.u32 [#allocation13], 4
          %s311 = int_to_ptr.vmem [resolvable:$true] %s310
          %316 = dma.hbm_to_vmem [thread:$0]  %s6, 384, %s311, [#allocation12], 128, 128, 8
        $region28: #{tpu_custom_call.1} parent=11 // pred_fallthru
          _
      $region12: #{tpu_custom_call.1} parent=5 // pred_fallthru
        _
      %p317 = scmp.lt.s32.totalorder %s24, 2
      // Predicated region
      $region29: #{tpu_custom_call.1} parent=5 // pred_check
        %p318 = pneg %p317
      $region30: #{tpu_custom_call.1} parent=5 // pred_check_branch
        %320 = sbr.rel (%p318) target = $region32
      $region31: #{tpu_custom_call.1} parent=5 // pred_region
        // Predicated region
        $region33: #{tpu_custom_call.1} parent=31 // pred_check
          %p321 = pneg %p134
        $region34: #{tpu_custom_call.1} parent=31 // pred_check_branch
          %323 = sbr.rel (%p321) target = $region36
        $region35: #{tpu_custom_call.1} parent=31 // pred_region
          %s324 = sand.u32 %s24, 1
          %s325 = scalar_lea.sflag [#allocation9], %s324
          %s326 = sand.u32 %s124, 1
          %s327 = smul.addr %s326, 512
          %s328 = scalar_lea.vmem [#allocation8], %s327
          %s329 = smul.u32 2, %s31
          %s331 = ssub.s32 8192, 8192
          %332 = vsyncadd %s325, %s331
          %s333 = smul.addr %s329, 64
          %s334 = scalar_lea.hbm %s3, %s333
          %s335 = sshll.u32 %s328, 4
          %s336 = int_to_ptr.vmem [resolvable:$true] %s335
          %341 = dma.hbm_to_vmem [thread:$0]  %s334, 8192, %s336, %s325, 256, 128, 8
        $region36: #{tpu_custom_call.1} parent=31 // pred_fallthru
          _
        // Predicated region
        $region37: #{tpu_custom_call.1} parent=31 // pred_check
          %p342 = pneg %p160
        $region38: #{tpu_custom_call.1} parent=31 // pred_check_branch
          %344 = sbr.rel (%p342) target = $region40
        $region39: #{tpu_custom_call.1} parent=31 // pred_region
          %s345 = sand.u32 %s24, 1
          %s346 = scalar_lea.sflag [#allocation9], %s345
          %s347 = sand.u32 %s150, 1
          %s348 = smul.addr %s347, 512
          %s349 = scalar_lea.vmem [#allocation10], %s348
          %s350 = smul.u32 2, %s31
          %s352 = ssub.s32 8192, 8192
          %353 = vsyncadd %s346, %s352
          %s354 = smul.addr %s350, 64
          %s355 = scalar_lea.hbm %s4, %s354
          %s356 = sshll.u32 %s349, 4
          %s357 = int_to_ptr.vmem [resolvable:$true] %s356
          %362 = dma.hbm_to_vmem [thread:$0]  %s355, 8192, %s357, %s346, 256, 128, 8
        $region40: #{tpu_custom_call.1} parent=31 // pred_fallthru
          _
        // Predicated region
        $region41: #{tpu_custom_call.1} parent=31 // pred_check
          %p363 = pneg %p186
        $region42: #{tpu_custom_call.1} parent=31 // pred_check_branch
          %365 = sbr.rel (%p363) target = $region44
        $region43: #{tpu_custom_call.1} parent=31 // pred_region
          %s366 = sand.u32 %s24, 1
          %s367 = scalar_lea.sflag [#allocation12], %s366
          %s368 = sand.u32 %s176, 1
          %s369 = smul.addr %s368, 512
          %s370 = scalar_lea.vmem [#allocation11], %s369
          %s371 = smul.u32 2, %s31
          %s373 = ssub.s32 8192, 8192
          %374 = vsyncadd %s367, %s373
          %s375 = smul.addr %s371, 64
          %s376 = scalar_lea.hbm %s5, %s375
          %s377 = sshll.u32 %s370, 4
          %s378 = int_to_ptr.vmem [resolvable:$true] %s377
          %383 = dma.hbm_to_vmem [thread:$0]  %s376, 8192, %s378, %s367, 256, 128, 8
        $region44: #{tpu_custom_call.1} parent=31 // pred_fallthru
          _
      $region32: #{tpu_custom_call.1} parent=5 // pred_fallthru
        _
      %p384 = scmp.le.s32.totalorder 1, %s24
      %p385 = scmp.lt.s32.totalorder %s24, 3
      %p386 = pnand %p384, %p385
      %p387 = pneg %p386
      // Predicated region
      $region45: #{tpu_custom_call.1} parent=5 // pred_check
        _
      $region46: #{tpu_custom_call.1} parent=5 // pred_check_branch
        %389 = sbr.rel (%p386) target = $region48
      $region47: #{tpu_custom_call.1} parent=5 // pred_region
        %s390 = ssub.s32 %s24, 1
        // Predicated region
        $region49: #{tpu_custom_call.1} parent=47 // pred_check
          %p391 = pneg %p62
        $region50: #{tpu_custom_call.1} parent=47 // pred_check_branch
          %393 = sbr.rel (%p391) target = $region52
        $region51: #{tpu_custom_call.1} parent=47 // pred_region
          %394 = dma.done [#allocation3], 768
        $region52: #{tpu_custom_call.1} parent=47 // pred_fallthru
          _
        // Predicated region
        $region53: #{tpu_custom_call.1} parent=47 // pred_check
          %p395 = pneg %p88
        $region54: #{tpu_custom_call.1} parent=47 // pred_check_branch
          %397 = sbr.rel (%p395) target = $region56
        $region55: #{tpu_custom_call.1} parent=47 // pred_region
          %398 = dma.done [#allocation6], 768
        $region56: #{tpu_custom_call.1} parent=47 // pred_fallthru
          _
        // Predicated region
        $region57: #{tpu_custom_call.1} parent=47 // pred_check
          %p399 = pneg %p114
        $region58: #{tpu_custom_call.1} parent=47 // pred_check_branch
          %401 = sbr.rel (%p399) target = $region60
        $region59: #{tpu_custom_call.1} parent=47 // pred_region
          %402 = dma.done [#allocation6], 768
        $region60: #{tpu_custom_call.1} parent=47 // pred_fallthru
          _
        %s403 = sand.u32 %s29, 1
        %s404 = scalar_lea.sflag [#allocation9], %s403
        %s405 = sand.u32 %s127, 1
        %s406 = smul.addr %s405, 512
        %s407 = scalar_lea.vmem [#allocation8], %s406
        // Predicated region
        $region61: #{tpu_custom_call.1} parent=47 // pred_check
          %p408 = pneg %p140
        $region62: #{tpu_custom_call.1} parent=47 // pred_check_branch
          %410 = sbr.rel (%p408) target = $region64
        $region63: #{tpu_custom_call.1} parent=47 // pred_region
          %411 = dma.done %s404, 8192
        $region64: #{tpu_custom_call.1} parent=47 // pred_fallthru
          _
        %s412 = sand.u32 %s29, 1
        %s413 = scalar_lea.sflag [#allocation9], %s412
        %s414 = sand.u32 %s153, 1
        %s415 = smul.addr %s414, 512
        %s416 = scalar_lea.vmem [#allocation10], %s415
        // Predicated region
        $region65: #{tpu_custom_call.1} parent=47 // pred_check
          %p417 = pneg %p166
        $region66: #{tpu_custom_call.1} parent=47 // pred_check_branch
          %419 = sbr.rel (%p417) target = $region68
        $region67: #{tpu_custom_call.1} parent=47 // pred_region
          %420 = dma.done %s413, 8192
        $region68: #{tpu_custom_call.1} parent=47 // pred_fallthru
          _
        %s421 = sand.u32 %s29, 1
        %s422 = scalar_lea.sflag [#allocation12], %s421
        %s423 = sand.u32 %s179, 1
        %s424 = smul.addr %s423, 512
        %s425 = scalar_lea.vmem [#allocation11], %s424
        // Predicated region
        $region69: #{tpu_custom_call.1} parent=47 // pred_check
          %p426 = pneg %p192
        $region70: #{tpu_custom_call.1} parent=47 // pred_check_branch
          %428 = sbr.rel (%p426) target = $region72
        $region71: #{tpu_custom_call.1} parent=47 // pred_region
          %429 = dma.done %s422, 8192
        $region72: #{tpu_custom_call.1} parent=47 // pred_fallthru
          _
        // Predicated region
        $region73: #{tpu_custom_call.1} parent=47 // pred_check
          %p430 = pneg %p213
        $region74: #{tpu_custom_call.1} parent=47 // pred_check_branch
          %432 = sbr.rel (%p430) target = $region76
        $region75: #{tpu_custom_call.1} parent=47 // pred_region
          %433 = dma.done [#allocation12], 384
        $region76: #{tpu_custom_call.1} parent=47 // pred_fallthru
          _
        %p434 = pneg %p62
        %p435 = pneg %p59
        %p436 = pneg %p88
        %p437 = pneg %p85
        %p438 = pneg %p114
        %p439 = pneg %p111
        %s440 = sand.u32 %s29, 1
        %s441 = scalar_lea.sflag [#allocation9], %s440
        %s442 = sand.u32 %s127, 1
        %s443 = smul.addr %s442, 512
        %s444 = scalar_lea.vmem [#allocation8], %s443
        %p445 = pneg %p140
        %p446 = pneg %p137
        %s447 = sand.u32 %s29, 1
        %s448 = scalar_lea.sflag [#allocation9], %s447
        %s449 = sand.u32 %s153, 1
        %s450 = smul.addr %s449, 512
        %s451 = scalar_lea.vmem [#allocation10], %s450
        %p452 = pneg %p166
        %p453 = pneg %p163
        %s454 = sand.u32 %s29, 1
        %s455 = scalar_lea.sflag [#allocation12], %s454
        %s456 = sand.u32 %s179, 1
        %s457 = smul.addr %s456, 512
        %s458 = scalar_lea.vmem [#allocation11], %s457
        %p459 = pneg %p192
        %p460 = pneg %p189
        %p461 = pneg %p213
        %p462 = pneg %p210
        %p463 = pneg %p241
        %p464 = pneg %p238
        %s465 = sand.u32 %s228, 1
        %s466 = scalar_lea.sflag [#allocation4], %s465
        %s467 = sand.u32 %s228, 1
        %s468 = smul.addr %s467, 48
        %s469 = scalar_lea.vmem [#allocation14], %s468
        %s470 = smul.u32 2, %s33
        %s471 = smul.u32 2, %s33
        %s472 = smul.u32 2, %s33
        %s473 = smul.u32 2, %s33
        %v474 = vld [vmem:[#allocation2] sm:$0xff]
        %v475 = vld [vmem:[#allocation2 + $0x8] sm:$0xff]
        %v476 = vld [vmem:[#allocation2 + $0x10] sm:$0xff]
        %v477 = vld [vmem:[#allocation2 + $0x18] sm:$0xff]
        %v478 = vld [vmem:[#allocation2 + $0x20] sm:$0xff]
        %v479 = vld [vmem:[#allocation2 + $0x28] sm:$0xff]
        %v480 = vld [vmem:[#allocation5] sm:$0xff]
        %v481 = vld [vmem:[#allocation5 + $0x8] sm:$0xff]
        %v482 = vld [vmem:[#allocation5 + $0x10] sm:$0xff]
        %v483 = vld [vmem:[#allocation5 + $0x18] sm:$0xff]
        %v484 = vld [vmem:[#allocation5 + $0x20] sm:$0xff]
        %v485 = vld [vmem:[#allocation5 + $0x28] sm:$0xff]
        %v486 = vld [vmem:[#allocation7] sm:$0xff]
        %v487 = vld [vmem:[#allocation7 + $0x8] sm:$0xff]
        %v488 = vld [vmem:[#allocation7 + $0x10] sm:$0xff]
        %v489 = vld [vmem:[#allocation7 + $0x18] sm:$0xff]
        %v490 = vld [vmem:[#allocation7 + $0x20] sm:$0xff]
        %v491 = vld [vmem:[#allocation7 + $0x28] sm:$0xff]
        %v492 = vld [vmem:[%s407] sm:$0xff]
        %v493 = vld [vmem:[%s407 + $0x8] sm:$0xff]
        %v494 = vld [vmem:[%s407 + $0x10] sm:$0xff]
        %v495 = vld [vmem:[%s407 + $0x18] sm:$0xff]
        %v496 = vld [vmem:[%s407 + $0x20] sm:$0xff]
        %v497 = vld [vmem:[%s407 + $0x28] sm:$0xff]
        %v498 = vld [vmem:[%s407 + $0x30] sm:$0xff]
        %v499 = vld [vmem:[%s407 + $0x38] sm:$0xff]
        %v500 = vld [vmem:[%s407 + $0x40] sm:$0xff]
        %v501 = vld [vmem:[%s407 + $0x48] sm:$0xff]
        %v502 = vld [vmem:[%s407 + $0x50] sm:$0xff]
        %v503 = vld [vmem:[%s407 + $0x58] sm:$0xff]
        %v504 = vld [vmem:[%s407 + $0x60] sm:$0xff]
        %v505 = vld [vmem:[%s407 + $0x68] sm:$0xff]
        %v506 = vld [vmem:[%s407 + $0x70] sm:$0xff]
        %v507 = vld [vmem:[%s407 + $0x78] sm:$0xff]
        %v508 = vld [vmem:[%s407 + $0x80] sm:$0xff]
        %v509 = vld [vmem:[%s407 + $0x88] sm:$0xff]
        %v510 = vld [vmem:[%s407 + $0x90] sm:$0xff]
        %v511 = vld [vmem:[%s407 + $0x98] sm:$0xff]
        %v512 = vld [vmem:[%s407 + $0xa0] sm:$0xff]
        %v513 = vld [vmem:[%s407 + $0xa8] sm:$0xff]
        %v514 = vld [vmem:[%s407 + $0xb0] sm:$0xff]
        %v515 = vld [vmem:[%s407 + $0xb8] sm:$0xff]
        %v516 = vld [vmem:[%s407 + $0xc0] sm:$0xff]
        %v517 = vld [vmem:[%s407 + $0xc8] sm:$0xff]
        %v518 = vld [vmem:[%s407 + $0xd0] sm:$0xff]
        %v519 = vld [vmem:[%s407 + $0xd8] sm:$0xff]
        %v520 = vld [vmem:[%s407 + $0xe0] sm:$0xff]
        %v521 = vld [vmem:[%s407 + $0xe8] sm:$0xff]
        %v522 = vld [vmem:[%s407 + $0xf0] sm:$0xff]
        %v523 = vld [vmem:[%s407 + $0xf8] sm:$0xff]
        %v524 = vld [vmem:[%s407 + $0x100] sm:$0xff]
        %v525 = vld [vmem:[%s407 + $0x108] sm:$0xff]
        %v526 = vld [vmem:[%s407 + $0x110] sm:$0xff]
        %v527 = vld [vmem:[%s407 + $0x118] sm:$0xff]
        %v528 = vld [vmem:[%s407 + $0x120] sm:$0xff]
        %v529 = vld [vmem:[%s407 + $0x128] sm:$0xff]
        %v530 = vld [vmem:[%s407 + $0x130] sm:$0xff]
        %v531 = vld [vmem:[%s407 + $0x138] sm:$0xff]
        %v532 = vld [vmem:[%s407 + $0x140] sm:$0xff]
        %v533 = vld [vmem:[%s407 + $0x148] sm:$0xff]
        %v534 = vld [vmem:[%s407 + $0x150] sm:$0xff]
        %v535 = vld [vmem:[%s407 + $0x158] sm:$0xff]
        %v536 = vld [vmem:[%s407 + $0x160] sm:$0xff]
        %v537 = vld [vmem:[%s407 + $0x168] sm:$0xff]
        %v538 = vld [vmem:[%s407 + $0x170] sm:$0xff]
        %v539 = vld [vmem:[%s407 + $0x178] sm:$0xff]
        %v540 = vld [vmem:[%s407 + $0x180] sm:$0xff]
        %v541 = vld [vmem:[%s407 + $0x188] sm:$0xff]
        %v542 = vld [vmem:[%s407 + $0x190] sm:$0xff]
        %v543 = vld [vmem:[%s407 + $0x198] sm:$0xff]
        %v544 = vld [vmem:[%s407 + $0x1a0] sm:$0xff]
        %v545 = vld [vmem:[%s407 + $0x1a8] sm:$0xff]
        %v546 = vld [vmem:[%s407 + $0x1b0] sm:$0xff]
        %v547 = vld [vmem:[%s407 + $0x1b8] sm:$0xff]
        %v548 = vld [vmem:[%s407 + $0x1c0] sm:$0xff]
        %v549 = vld [vmem:[%s407 + $0x1c8] sm:$0xff]
        %v550 = vld [vmem:[%s407 + $0x1d0] sm:$0xff]
        %v551 = vld [vmem:[%s407 + $0x1d8] sm:$0xff]
        %v552 = vld [vmem:[%s407 + $0x1e0] sm:$0xff]
        %v553 = vld [vmem:[%s407 + $0x1e8] sm:$0xff]
        %v554 = vld [vmem:[%s407 + $0x1f0] sm:$0xff]
        %v555 = vld [vmem:[%s407 + $0x1f8] sm:$0xff]
        %v562 = vunpack.c.l.b16 %v474
        %v563 = vunpack.c.h.b16 %v474
        %v564 = vunpack.c.l.b16 %v475
        %v565 = vunpack.c.h.b16 %v475
        %v566 = vunpack.c.l.b16 %v476
        %v567 = vunpack.c.h.b16 %v476
        %v568 = vunpack.c.l.b16 %v477
        %v569 = vunpack.c.h.b16 %v477
        %v570 = vunpack.c.l.b16 %v478
        %v571 = vunpack.c.h.b16 %v478
        %v572 = vunpack.c.l.b16 %v479
        %v573 = vunpack.c.h.b16 %v479
        %v574 = vpack.c.b16 %v566, %v562
        %v575 = vpack.c.b16 %v567, %v563
        %v576 = vpack.c.b16 %v568, %v564
        %v577 = vpack.c.b16 %v569, %v565
        %v578 = vpack.c.b16 %v570, %v570
        %v579 = vpack.c.b16 %v571, %v571
        %v580 = vpack.c.b16 %v572, %v572
        %v581 = vpack.c.b16 %v573, %v573
        %v654 = vunpack.c.l.b16 %v492
        %v655 = vunpack.c.h.b16 %v492
        %v656 = vunpack.c.l.b16 %v493
        %v657 = vunpack.c.h.b16 %v493
        %v658 = vunpack.c.l.b16 %v494
        %v659 = vunpack.c.h.b16 %v494
        %v660 = vunpack.c.l.b16 %v495
        %v661 = vunpack.c.h.b16 %v495
        %v662 = vunpack.c.l.b16 %v496
        %v663 = vunpack.c.h.b16 %v496
        %v664 = vunpack.c.l.b16 %v497
        %v665 = vunpack.c.h.b16 %v497
        %v666 = vunpack.c.l.b16 %v498
        %v667 = vunpack.c.h.b16 %v498
        %v668 = vunpack.c.l.b16 %v499
        %v669 = vunpack.c.h.b16 %v499
        %v670 = vunpack.c.l.b16 %v500
        %v671 = vunpack.c.h.b16 %v500
        %v672 = vunpack.c.l.b16 %v501
        %v673 = vunpack.c.h.b16 %v501
        %v674 = vunpack.c.l.b16 %v502
        %v675 = vunpack.c.h.b16 %v502
        %v676 = vunpack.c.l.b16 %v503
        %v677 = vunpack.c.h.b16 %v503
        %v678 = vunpack.c.l.b16 %v504
        %v679 = vunpack.c.h.b16 %v504
        %v680 = vunpack.c.l.b16 %v505
        %v681 = vunpack.c.h.b16 %v505
        %v682 = vunpack.c.l.b16 %v506
        %v683 = vunpack.c.h.b16 %v506
        %v684 = vunpack.c.l.b16 %v507
        %v685 = vunpack.c.h.b16 %v507
        %v686 = vunpack.c.l.b16 %v508
        %v687 = vunpack.c.h.b16 %v508
        %v688 = vunpack.c.l.b16 %v509
        %v689 = vunpack.c.h.b16 %v509
        %v690 = vunpack.c.l.b16 %v510
        %v691 = vunpack.c.h.b16 %v510
        %v692 = vunpack.c.l.b16 %v511
        %v693 = vunpack.c.h.b16 %v511
        %v694 = vunpack.c.l.b16 %v512
        %v695 = vunpack.c.h.b16 %v512
        %v696 = vunpack.c.l.b16 %v513
        %v697 = vunpack.c.h.b16 %v513
        %v698 = vunpack.c.l.b16 %v514
        %v699 = vunpack.c.h.b16 %v514
        %v700 = vunpack.c.l.b16 %v515
        %v701 = vunpack.c.h.b16 %v515
        %v702 = vunpack.c.l.b16 %v516
        %v703 = vunpack.c.h.b16 %v516
        %v704 = vunpack.c.l.b16 %v517
        %v705 = vunpack.c.h.b16 %v517
        %v706 = vunpack.c.l.b16 %v518
        %v707 = vunpack.c.h.b16 %v518
        %v708 = vunpack.c.l.b16 %v519
        %v709 = vunpack.c.h.b16 %v519
        %v710 = vunpack.c.l.b16 %v520
        %v711 = vunpack.c.h.b16 %v520
        %v712 = vunpack.c.l.b16 %v521
        %v713 = vunpack.c.h.b16 %v521
        %v714 = vunpack.c.l.b16 %v522
        %v715 = vunpack.c.h.b16 %v522
        %v716 = vunpack.c.l.b16 %v523
        %v717 = vunpack.c.h.b16 %v523
        %v718 = vunpack.c.l.b16 %v524
        %v719 = vunpack.c.h.b16 %v524
        %v720 = vunpack.c.l.b16 %v525
        %v721 = vunpack.c.h.b16 %v525
        %v722 = vunpack.c.l.b16 %v526
        %v723 = vunpack.c.h.b16 %v526
        %v724 = vunpack.c.l.b16 %v527
        %v725 = vunpack.c.h.b16 %v527
        %v726 = vunpack.c.l.b16 %v528
        %v727 = vunpack.c.h.b16 %v528
        %v728 = vunpack.c.l.b16 %v529
        %v729 = vunpack.c.h.b16 %v529
        %v730 = vunpack.c.l.b16 %v530
        %v731 = vunpack.c.h.b16 %v530
        %v732 = vunpack.c.l.b16 %v531
        %v733 = vunpack.c.h.b16 %v531
        %v734 = vunpack.c.l.b16 %v532
        %v735 = vunpack.c.h.b16 %v532
        %v736 = vunpack.c.l.b16 %v533
        %v737 = vunpack.c.h.b16 %v533
        %v738 = vunpack.c.l.b16 %v534
        %v739 = vunpack.c.h.b16 %v534
        %v740 = vunpack.c.l.b16 %v535
        %v741 = vunpack.c.h.b16 %v535
        %v742 = vunpack.c.l.b16 %v536
        %v743 = vunpack.c.h.b16 %v536
        %v744 = vunpack.c.l.b16 %v537
        %v745 = vunpack.c.h.b16 %v537
        %v746 = vunpack.c.l.b16 %v538
        %v747 = vunpack.c.h.b16 %v538
        %v748 = vunpack.c.l.b16 %v539
        %v749 = vunpack.c.h.b16 %v539
        %v750 = vunpack.c.l.b16 %v540
        %v751 = vunpack.c.h.b16 %v540
        %v752 = vunpack.c.l.b16 %v541
        %v753 = vunpack.c.h.b16 %v541
        %v754 = vunpack.c.l.b16 %v542
        %v755 = vunpack.c.h.b16 %v542
        %v756 = vunpack.c.l.b16 %v543
        %v757 = vunpack.c.h.b16 %v543
        %v758 = vunpack.c.l.b16 %v544
        %v759 = vunpack.c.h.b16 %v544
        %v760 = vunpack.c.l.b16 %v545
        %v761 = vunpack.c.h.b16 %v545
        %v762 = vunpack.c.l.b16 %v546
        %v763 = vunpack.c.h.b16 %v546
        %v764 = vunpack.c.l.b16 %v547
        %v765 = vunpack.c.h.b16 %v547
        %v766 = vunpack.c.l.b16 %v548
        %v767 = vunpack.c.h.b16 %v548
        %v768 = vunpack.c.l.b16 %v549
        %v769 = vunpack.c.h.b16 %v549
        %v770 = vunpack.c.l.b16 %v550
        %v771 = vunpack.c.h.b16 %v550
        %v772 = vunpack.c.l.b16 %v551
        %v773 = vunpack.c.h.b16 %v551
        %v774 = vunpack.c.l.b16 %v552
        %v775 = vunpack.c.h.b16 %v552
        %v776 = vunpack.c.l.b16 %v553
        %v777 = vunpack.c.h.b16 %v553
        %v778 = vunpack.c.l.b16 %v554
        %v779 = vunpack.c.h.b16 %v554
        %v780 = vunpack.c.l.b16 %v555
        %v781 = vunpack.c.h.b16 %v555
        %v782 = vpack.c.b16 %v656, %v654
        %v783 = vpack.c.b16 %v657, %v655
        %v784 = vpack.c.b16 %v660, %v658
        %v785 = vpack.c.b16 %v661, %v659
        %v786 = vpack.c.b16 %v664, %v662
        %v787 = vpack.c.b16 %v665, %v663
        %v788 = vpack.c.b16 %v668, %v666
        %v789 = vpack.c.b16 %v669, %v667
        %v790 = vpack.c.b16 %v672, %v670
        %v791 = vpack.c.b16 %v673, %v671
        %v792 = vpack.c.b16 %v676, %v674
        %v793 = vpack.c.b16 %v677, %v675
        %v794 = vpack.c.b16 %v680, %v678
        %v795 = vpack.c.b16 %v681, %v679
        %v796 = vpack.c.b16 %v684, %v682
        %v797 = vpack.c.b16 %v685, %v683
        %v798 = vpack.c.b16 %v688, %v686
        %v799 = vpack.c.b16 %v689, %v687
        %v800 = vpack.c.b16 %v692, %v690
        %v801 = vpack.c.b16 %v693, %v691
        %v802 = vpack.c.b16 %v696, %v694
        %v803 = vpack.c.b16 %v697, %v695
        %v804 = vpack.c.b16 %v700, %v698
        %v805 = vpack.c.b16 %v701, %v699
        %v806 = vpack.c.b16 %v704, %v702
        %v807 = vpack.c.b16 %v705, %v703
        %v808 = vpack.c.b16 %v708, %v706
        %v809 = vpack.c.b16 %v709, %v707
        %v810 = vpack.c.b16 %v712, %v710
        %v811 = vpack.c.b16 %v713, %v711
        %v812 = vpack.c.b16 %v716, %v714
        %v813 = vpack.c.b16 %v717, %v715
        %v814 = vpack.c.b16 %v720, %v718
        %v815 = vpack.c.b16 %v721, %v719
        %v816 = vpack.c.b16 %v724, %v722
        %v817 = vpack.c.b16 %v725, %v723
        %v818 = vpack.c.b16 %v728, %v726
        %v819 = vpack.c.b16 %v729, %v727
        %v820 = vpack.c.b16 %v732, %v730
        %v821 = vpack.c.b16 %v733, %v731
        %v822 = vpack.c.b16 %v736, %v734
        %v823 = vpack.c.b16 %v737, %v735
        %v824 = vpack.c.b16 %v740, %v738
        %v825 = vpack.c.b16 %v741, %v739
        %v826 = vpack.c.b16 %v744, %v742
        %v827 = vpack.c.b16 %v745, %v743
        %v828 = vpack.c.b16 %v748, %v746
        %v829 = vpack.c.b16 %v749, %v747
        %v830 = vpack.c.b16 %v752, %v750
        %v831 = vpack.c.b16 %v753, %v751
        %v832 = vpack.c.b16 %v756, %v754
        %v833 = vpack.c.b16 %v757, %v755
        %v834 = vpack.c.b16 %v760, %v758
        %v835 = vpack.c.b16 %v761, %v759
        %v836 = vpack.c.b16 %v764, %v762
        %v837 = vpack.c.b16 %v765, %v763
        %v838 = vpack.c.b16 %v768, %v766
        %v839 = vpack.c.b16 %v769, %v767
        %v840 = vpack.c.b16 %v772, %v770
        %v841 = vpack.c.b16 %v773, %v771
        %v842 = vpack.c.b16 %v776, %v774
        %v843 = vpack.c.b16 %v777, %v775
        %v844 = vpack.c.b16 %v780, %v778
        %v845 = vpack.c.b16 %v781, %v779
        %910 = vmatprep.subr.bf16.mxu0 %v797
        %911 = vmatpush1.bf16.msra.mxu0 %v796
        %912 = vmatprep.subr.bf16.mxu0 %v795
        %913 = vmatpush1.bf16.msra.mxu0 %v794
        %914 = vmatprep.subr.bf16.mxu0 %v793
        %915 = vmatpush1.bf16.msra.mxu0 %v792
        %916 = vmatprep.subr.bf16.mxu0 %v791
        %917 = vmatpush1.bf16.msra.mxu0 %v790
        %918 = vmatprep.subr.bf16.mxu0 %v789
        %919 = vmatpush1.bf16.msra.mxu0 %v788
        %920 = vmatprep.subr.bf16.mxu0 %v787
        %921 = vmatpush1.bf16.msra.mxu0 %v786
        %922 = vmatprep.subr.bf16.mxu0 %v785
        %923 = vmatpush1.bf16.msra.mxu0 %v784
        %924 = vmatprep.subr.bf16.mxu0 %v783
        %925 = vmatpush1.bf16.msra.mxu0 %v782
        %926 = vmatprep.subr.bf16.mxu0 %v813
        %927 = vmatpush2.bf16.msra.mxu0 %v812
        %928 = vmatprep.subr.bf16.mxu0 %v811
        %929 = vmatpush2.bf16.msra.mxu0 %v810
        %930 = vmatprep.subr.bf16.mxu0 %v809
        %931 = vmatpush2.bf16.msra.mxu0 %v808
        %932 = vmatprep.subr.bf16.mxu0 %v807
        %933 = vmatpush2.bf16.msra.mxu0 %v806
        %934 = vmatprep.subr.bf16.mxu0 %v805
        %935 = vmatpush2.bf16.msra.mxu0 %v804
        %936 = vmatprep.subr.bf16.mxu0 %v803
        %937 = vmatpush2.bf16.msra.mxu0 %v802
        %938 = vmatprep.subr.bf16.mxu0 %v801
        %939 = vmatpush2.bf16.msra.mxu0 %v800
        %940 = vmatprep.subr.bf16.mxu0 %v799
        %941 = vmatpush2.bf16.msra.mxu0 %v798
        %942 = vmatprep.mubr.bf16.mxu0 %v575
        %943 = vmatmul.mubr.bf16.gmra.mxu0 %v574
        %v944 = vpop.f32.mrf.mxu0
        %v945 = vadd.f32 0.0, %v944
        %v946 = vpop.f32.mrf.mxu0
        %v947 = vadd.f32 0.0, %v946
        %v948 = vpop.f32.mrf.mxu0
        %v949 = vadd.f32 0.0, %v948
        %v950 = vpop.f32.mrf.mxu0
        %v951 = vadd.f32 0.0, %v950
        %952 = vmatprep.mubr.bf16.mxu0 %v579
        %953 = vmatmul.mubr.bf16.gmra.mxu0 %v578
        %v954 = vpop.f32.mrf.mxu0
        %v955 = vadd.f32 0.0, %v954
        %v956 = vpop.f32.mrf.mxu0
        %v957 = vadd.f32 0.0, %v956
        %v958 = vpop.f32.mrf.mxu0
        %v959 = vpop.f32.mrf.mxu0
        %960 = vdwg.mxu0
        %961 = vmatprep.subr.bf16.mxu0 %v829
        %962 = vmatpush1.bf16.msra.mxu0 %v828
        %963 = vmatprep.subr.bf16.mxu0 %v827
        %964 = vmatpush1.bf16.msra.mxu0 %v826
        %965 = vmatprep.subr.bf16.mxu0 %v825
        %966 = vmatpush1.bf16.msra.mxu0 %v824
        %967 = vmatprep.subr.bf16.mxu0 %v823
        %968 = vmatpush1.bf16.msra.mxu0 %v822
        %969 = vmatprep.subr.bf16.mxu0 %v821
        %970 = vmatpush1.bf16.msra.mxu0 %v820
        %971 = vmatprep.subr.bf16.mxu0 %v819
        %972 = vmatpush1.bf16.msra.mxu0 %v818
        %973 = vmatprep.subr.bf16.mxu0 %v817
        %974 = vmatpush1.bf16.msra.mxu0 %v816
        %975 = vmatprep.subr.bf16.mxu0 %v815
        %976 = vmatpush1.bf16.msra.mxu0 %v814
        %977 = vmatprep.subr.bf16.mxu0 %v845
        %978 = vmatpush2.bf16.msra.mxu0 %v844
        %979 = vmatprep.subr.bf16.mxu0 %v843
        %980 = vmatpush2.bf16.msra.mxu0 %v842
        %981 = vmatprep.subr.bf16.mxu0 %v841
        %982 = vmatpush2.bf16.msra.mxu0 %v840
        %983 = vmatprep.subr.bf16.mxu0 %v839
        %984 = vmatpush2.bf16.msra.mxu0 %v838
        %985 = vmatprep.subr.bf16.mxu0 %v837
        %986 = vmatpush2.bf16.msra.mxu0 %v836
        %987 = vmatprep.subr.bf16.mxu0 %v835
        %988 = vmatpush2.bf16.msra.mxu0 %v834
        %989 = vmatprep.subr.bf16.mxu0 %v833
        %990 = vmatpush2.bf16.msra.mxu0 %v832
        %991 = vmatprep.subr.bf16.mxu0 %v831
        %992 = vmatpush2.bf16.msra.mxu0 %v830
        %993 = vmatprep.mubr.bf16.mxu0 %v577
        %994 = vmatmul.mubr.bf16.gmra.mxu0 %v576
        %v995 = vpop.f32.mrf.mxu0
        %v996 = vadd.f32 %v945, %v995
        %v997 = vpop.f32.mrf.mxu0
        %v998 = vadd.f32 %v947, %v997
        %v999 = vpop.f32.mrf.mxu0
        %v1000 = vadd.f32 %v949, %v999
        %v1001 = vpop.f32.mrf.mxu0
        %v1002 = vadd.f32 %v951, %v1001
        %1003 = vmatprep.mubr.bf16.mxu0 %v581
        %1004 = vmatmul.mubr.bf16.gmra.mxu0 %v580
        %v1005 = vpop.f32.mrf.mxu0
        %v1006 = vadd.f32 %v955, %v1005
        %v1007 = vpop.f32.mrf.mxu0
        %v1008 = vadd.f32 %v957, %v1007
        %v1009 = vpop.f32.mrf.mxu0
        %v1010 = vpop.f32.mrf.mxu0
        %1011 = vdwg.mxu0
        %v1012 = vld [vmem:[%s416] sm:$0xff]
        %v1013 = vld [vmem:[%s416 + $0x8] sm:$0xff]
        %v1014 = vld [vmem:[%s416 + $0x10] sm:$0xff]
        %v1015 = vld [vmem:[%s416 + $0x18] sm:$0xff]
        %v1016 = vld [vmem:[%s416 + $0x20] sm:$0xff]
        %v1017 = vld [vmem:[%s416 + $0x28] sm:$0xff]
        %v1018 = vld [vmem:[%s416 + $0x30] sm:$0xff]
        %v1019 = vld [vmem:[%s416 + $0x38] sm:$0xff]
        %v1020 = vld [vmem:[%s416 + $0x40] sm:$0xff]
        %v1021 = vld [vmem:[%s416 + $0x48] sm:$0xff]
        %v1022 = vld [vmem:[%s416 + $0x50] sm:$0xff]
        %v1023 = vld [vmem:[%s416 + $0x58] sm:$0xff]
        %v1024 = vld [vmem:[%s416 + $0x60] sm:$0xff]
        %v1025 = vld [vmem:[%s416 + $0x68] sm:$0xff]
        %v1026 = vld [vmem:[%s416 + $0x70] sm:$0xff]
        %v1027 = vld [vmem:[%s416 + $0x78] sm:$0xff]
        %v1028 = vld [vmem:[%s416 + $0x80] sm:$0xff]
        %v1029 = vld [vmem:[%s416 + $0x88] sm:$0xff]
        %v1030 = vld [vmem:[%s416 + $0x90] sm:$0xff]
        %v1031 = vld [vmem:[%s416 + $0x98] sm:$0xff]
        %v1032 = vld [vmem:[%s416 + $0xa0] sm:$0xff]
        %v1033 = vld [vmem:[%s416 + $0xa8] sm:$0xff]
        %v1034 = vld [vmem:[%s416 + $0xb0] sm:$0xff]
        %v1035 = vld [vmem:[%s416 + $0xb8] sm:$0xff]
        %v1036 = vld [vmem:[%s416 + $0xc0] sm:$0xff]
        %v1037 = vld [vmem:[%s416 + $0xc8] sm:$0xff]
        %v1038 = vld [vmem:[%s416 + $0xd0] sm:$0xff]
        %v1039 = vld [vmem:[%s416 + $0xd8] sm:$0xff]
        %v1040 = vld [vmem:[%s416 + $0xe0] sm:$0xff]
        %v1041 = vld [vmem:[%s416 + $0xe8] sm:$0xff]
        %v1042 = vld [vmem:[%s416 + $0xf0] sm:$0xff]
        %v1043 = vld [vmem:[%s416 + $0xf8] sm:$0xff]
        %v1044 = vld [vmem:[%s416 + $0x100] sm:$0xff]
        %v1045 = vld [vmem:[%s416 + $0x108] sm:$0xff]
        %v1046 = vld [vmem:[%s416 + $0x110] sm:$0xff]
        %v1047 = vld [vmem:[%s416 + $0x118] sm:$0xff]
        %v1048 = vld [vmem:[%s416 + $0x120] sm:$0xff]
        %v1049 = vld [vmem:[%s416 + $0x128] sm:$0xff]
        %v1050 = vld [vmem:[%s416 + $0x130] sm:$0xff]
        %v1051 = vld [vmem:[%s416 + $0x138] sm:$0xff]
        %v1052 = vld [vmem:[%s416 + $0x140] sm:$0xff]
        %v1053 = vld [vmem:[%s416 + $0x148] sm:$0xff]
        %v1054 = vld [vmem:[%s416 + $0x150] sm:$0xff]
        %v1055 = vld [vmem:[%s416 + $0x158] sm:$0xff]
        %v1056 = vld [vmem:[%s416 + $0x160] sm:$0xff]
        %v1057 = vld [vmem:[%s416 + $0x168] sm:$0xff]
        %v1058 = vld [vmem:[%s416 + $0x170] sm:$0xff]
        %v1059 = vld [vmem:[%s416 + $0x178] sm:$0xff]
        %v1060 = vld [vmem:[%s416 + $0x180] sm:$0xff]
        %v1061 = vld [vmem:[%s416 + $0x188] sm:$0xff]
        %v1062 = vld [vmem:[%s416 + $0x190] sm:$0xff]
        %v1063 = vld [vmem:[%s416 + $0x198] sm:$0xff]
        %v1064 = vld [vmem:[%s416 + $0x1a0] sm:$0xff]
        %v1065 = vld [vmem:[%s416 + $0x1a8] sm:$0xff]
        %v1066 = vld [vmem:[%s416 + $0x1b0] sm:$0xff]
        %v1067 = vld [vmem:[%s416 + $0x1b8] sm:$0xff]
        %v1068 = vld [vmem:[%s416 + $0x1c0] sm:$0xff]
        %v1069 = vld [vmem:[%s416 + $0x1c8] sm:$0xff]
        %v1070 = vld [vmem:[%s416 + $0x1d0] sm:$0xff]
        %v1071 = vld [vmem:[%s416 + $0x1d8] sm:$0xff]
        %v1072 = vld [vmem:[%s416 + $0x1e0] sm:$0xff]
        %v1073 = vld [vmem:[%s416 + $0x1e8] sm:$0xff]
        %v1074 = vld [vmem:[%s416 + $0x1f0] sm:$0xff]
        %v1075 = vld [vmem:[%s416 + $0x1f8] sm:$0xff]
        %v1082 = vunpack.c.l.b16 %v480
        %v1083 = vunpack.c.h.b16 %v480
        %v1084 = vunpack.c.l.b16 %v481
        %v1085 = vunpack.c.h.b16 %v481
        %v1086 = vunpack.c.l.b16 %v482
        %v1087 = vunpack.c.h.b16 %v482
        %v1088 = vunpack.c.l.b16 %v483
        %v1089 = vunpack.c.h.b16 %v483
        %v1090 = vunpack.c.l.b16 %v484
        %v1091 = vunpack.c.h.b16 %v484
        %v1092 = vunpack.c.l.b16 %v485
        %v1093 = vunpack.c.h.b16 %v485
        %v1094 = vpack.c.b16 %v1086, %v1082
        %v1095 = vpack.c.b16 %v1087, %v1083
        %v1096 = vpack.c.b16 %v1088, %v1084
        %v1097 = vpack.c.b16 %v1089, %v1085
        %v1098 = vpack.c.b16 %v1090, %v1090
        %v1099 = vpack.c.b16 %v1091, %v1091
        %v1100 = vpack.c.b16 %v1092, %v1092
        %v1101 = vpack.c.b16 %v1093, %v1093
        %v1174 = vunpack.c.l.b16 %v1012
        %v1175 = vunpack.c.h.b16 %v1012
        %v1176 = vunpack.c.l.b16 %v1013
        %v1177 = vunpack.c.h.b16 %v1013
        %v1178 = vunpack.c.l.b16 %v1014
        %v1179 = vunpack.c.h.b16 %v1014
        %v1180 = vunpack.c.l.b16 %v1015
        %v1181 = vunpack.c.h.b16 %v1015
        %v1182 = vunpack.c.l.b16 %v1016
        %v1183 = vunpack.c.h.b16 %v1016
        %v1184 = vunpack.c.l.b16 %v1017
        %v1185 = vunpack.c.h.b16 %v1017
        %v1186 = vunpack.c.l.b16 %v1018
        %v1187 = vunpack.c.h.b16 %v1018
        %v1188 = vunpack.c.l.b16 %v1019
        %v1189 = vunpack.c.h.b16 %v1019
        %v1190 = vunpack.c.l.b16 %v1020
        %v1191 = vunpack.c.h.b16 %v1020
        %v1192 = vunpack.c.l.b16 %v1021
        %v1193 = vunpack.c.h.b16 %v1021
        %v1194 = vunpack.c.l.b16 %v1022
        %v1195 = vunpack.c.h.b16 %v1022
        %v1196 = vunpack.c.l.b16 %v1023
        %v1197 = vunpack.c.h.b16 %v1023
        %v1198 = vunpack.c.l.b16 %v1024
        %v1199 = vunpack.c.h.b16 %v1024
        %v1200 = vunpack.c.l.b16 %v1025
        %v1201 = vunpack.c.h.b16 %v1025
        %v1202 = vunpack.c.l.b16 %v1026
        %v1203 = vunpack.c.h.b16 %v1026
        %v1204 = vunpack.c.l.b16 %v1027
        %v1205 = vunpack.c.h.b16 %v1027
        %v1206 = vunpack.c.l.b16 %v1028
        %v1207 = vunpack.c.h.b16 %v1028
        %v1208 = vunpack.c.l.b16 %v1029
        %v1209 = vunpack.c.h.b16 %v1029
        %v1210 = vunpack.c.l.b16 %v1030
        %v1211 = vunpack.c.h.b16 %v1030
        %v1212 = vunpack.c.l.b16 %v1031
        %v1213 = vunpack.c.h.b16 %v1031
        %v1214 = vunpack.c.l.b16 %v1032
        %v1215 = vunpack.c.h.b16 %v1032
        %v1216 = vunpack.c.l.b16 %v1033
        %v1217 = vunpack.c.h.b16 %v1033
        %v1218 = vunpack.c.l.b16 %v1034
        %v1219 = vunpack.c.h.b16 %v1034
        %v1220 = vunpack.c.l.b16 %v1035
        %v1221 = vunpack.c.h.b16 %v1035
        %v1222 = vunpack.c.l.b16 %v1036
        %v1223 = vunpack.c.h.b16 %v1036
        %v1224 = vunpack.c.l.b16 %v1037
        %v1225 = vunpack.c.h.b16 %v1037
        %v1226 = vunpack.c.l.b16 %v1038
        %v1227 = vunpack.c.h.b16 %v1038
        %v1228 = vunpack.c.l.b16 %v1039
        %v1229 = vunpack.c.h.b16 %v1039
        %v1230 = vunpack.c.l.b16 %v1040
        %v1231 = vunpack.c.h.b16 %v1040
        %v1232 = vunpack.c.l.b16 %v1041
        %v1233 = vunpack.c.h.b16 %v1041
        %v1234 = vunpack.c.l.b16 %v1042
        %v1235 = vunpack.c.h.b16 %v1042
        %v1236 = vunpack.c.l.b16 %v1043
        %v1237 = vunpack.c.h.b16 %v1043
        %v1238 = vunpack.c.l.b16 %v1044
        %v1239 = vunpack.c.h.b16 %v1044
        %v1240 = vunpack.c.l.b16 %v1045
        %v1241 = vunpack.c.h.b16 %v1045
        %v1242 = vunpack.c.l.b16 %v1046
        %v1243 = vunpack.c.h.b16 %v1046
        %v1244 = vunpack.c.l.b16 %v1047
        %v1245 = vunpack.c.h.b16 %v1047
        %v1246 = vunpack.c.l.b16 %v1048
        %v1247 = vunpack.c.h.b16 %v1048
        %v1248 = vunpack.c.l.b16 %v1049
        %v1249 = vunpack.c.h.b16 %v1049
        %v1250 = vunpack.c.l.b16 %v1050
        %v1251 = vunpack.c.h.b16 %v1050
        %v1252 = vunpack.c.l.b16 %v1051
        %v1253 = vunpack.c.h.b16 %v1051
        %v1254 = vunpack.c.l.b16 %v1052
        %v1255 = vunpack.c.h.b16 %v1052
        %v1256 = vunpack.c.l.b16 %v1053
        %v1257 = vunpack.c.h.b16 %v1053
        %v1258 = vunpack.c.l.b16 %v1054
        %v1259 = vunpack.c.h.b16 %v1054
        %v1260 = vunpack.c.l.b16 %v1055
        %v1261 = vunpack.c.h.b16 %v1055
        %v1262 = vunpack.c.l.b16 %v1056
        %v1263 = vunpack.c.h.b16 %v1056
        %v1264 = vunpack.c.l.b16 %v1057
        %v1265 = vunpack.c.h.b16 %v1057
        %v1266 = vunpack.c.l.b16 %v1058
        %v1267 = vunpack.c.h.b16 %v1058
        %v1268 = vunpack.c.l.b16 %v1059
        %v1269 = vunpack.c.h.b16 %v1059
        %v1270 = vunpack.c.l.b16 %v1060
        %v1271 = vunpack.c.h.b16 %v1060
        %v1272 = vunpack.c.l.b16 %v1061
        %v1273 = vunpack.c.h.b16 %v1061
        %v1274 = vunpack.c.l.b16 %v1062
        %v1275 = vunpack.c.h.b16 %v1062
        %v1276 = vunpack.c.l.b16 %v1063
        %v1277 = vunpack.c.h.b16 %v1063
        %v1278 = vunpack.c.l.b16 %v1064
        %v1279 = vunpack.c.h.b16 %v1064
        %v1280 = vunpack.c.l.b16 %v1065
        %v1281 = vunpack.c.h.b16 %v1065
        %v1282 = vunpack.c.l.b16 %v1066
        %v1283 = vunpack.c.h.b16 %v1066
        %v1284 = vunpack.c.l.b16 %v1067
        %v1285 = vunpack.c.h.b16 %v1067
        %v1286 = vunpack.c.l.b16 %v1068
        %v1287 = vunpack.c.h.b16 %v1068
        %v1288 = vunpack.c.l.b16 %v1069
        %v1289 = vunpack.c.h.b16 %v1069
        %v1290 = vunpack.c.l.b16 %v1070
        %v1291 = vunpack.c.h.b16 %v1070
        %v1292 = vunpack.c.l.b16 %v1071
        %v1293 = vunpack.c.h.b16 %v1071
        %v1294 = vunpack.c.l.b16 %v1072
        %v1295 = vunpack.c.h.b16 %v1072
        %v1296 = vunpack.c.l.b16 %v1073
        %v1297 = vunpack.c.h.b16 %v1073
        %v1298 = vunpack.c.l.b16 %v1074
        %v1299 = vunpack.c.h.b16 %v1074
        %v1300 = vunpack.c.l.b16 %v1075
        %v1301 = vunpack.c.h.b16 %v1075
        %v1302 = vpack.c.b16 %v1176, %v1174
        %v1303 = vpack.c.b16 %v1177, %v1175
        %v1304 = vpack.c.b16 %v1180, %v1178
        %v1305 = vpack.c.b16 %v1181, %v1179
        %v1306 = vpack.c.b16 %v1184, %v1182
        %v1307 = vpack.c.b16 %v1185, %v1183
        %v1308 = vpack.c.b16 %v1188, %v1186
        %v1309 = vpack.c.b16 %v1189, %v1187
        %v1310 = vpack.c.b16 %v1192, %v1190
        %v1311 = vpack.c.b16 %v1193, %v1191
        %v1312 = vpack.c.b16 %v1196, %v1194
        %v1313 = vpack.c.b16 %v1197, %v1195
        %v1314 = vpack.c.b16 %v1200, %v1198
        %v1315 = vpack.c.b16 %v1201, %v1199
        %v1316 = vpack.c.b16 %v1204, %v1202
        %v1317 = vpack.c.b16 %v1205, %v1203
        %v1318 = vpack.c.b16 %v1208, %v1206
        %v1319 = vpack.c.b16 %v1209, %v1207
        %v1320 = vpack.c.b16 %v1212, %v1210
        %v1321 = vpack.c.b16 %v1213, %v1211
        %v1322 = vpack.c.b16 %v1216, %v1214
        %v1323 = vpack.c.b16 %v1217, %v1215
        %v1324 = vpack.c.b16 %v1220, %v1218
        %v1325 = vpack.c.b16 %v1221, %v1219
        %v1326 = vpack.c.b16 %v1224, %v1222
        %v1327 = vpack.c.b16 %v1225, %v1223
        %v1328 = vpack.c.b16 %v1228, %v1226
        %v1329 = vpack.c.b16 %v1229, %v1227
        %v1330 = vpack.c.b16 %v1232, %v1230
        %v1331 = vpack.c.b16 %v1233, %v1231
        %v1332 = vpack.c.b16 %v1236, %v1234
        %v1333 = vpack.c.b16 %v1237, %v1235
        %v1334 = vpack.c.b16 %v1240, %v1238
        %v1335 = vpack.c.b16 %v1241, %v1239
        %v1336 = vpack.c.b16 %v1244, %v1242
        %v1337 = vpack.c.b16 %v1245, %v1243
        %v1338 = vpack.c.b16 %v1248, %v1246
        %v1339 = vpack.c.b16 %v1249, %v1247
        %v1340 = vpack.c.b16 %v1252, %v1250
        %v1341 = vpack.c.b16 %v1253, %v1251
        %v1342 = vpack.c.b16 %v1256, %v1254
        %v1343 = vpack.c.b16 %v1257, %v1255
        %v1344 = vpack.c.b16 %v1260, %v1258
        %v1345 = vpack.c.b16 %v1261, %v1259
        %v1346 = vpack.c.b16 %v1264, %v1262
        %v1347 = vpack.c.b16 %v1265, %v1263
        %v1348 = vpack.c.b16 %v1268, %v1266
        %v1349 = vpack.c.b16 %v1269, %v1267
        %v1350 = vpack.c.b16 %v1272, %v1270
        %v1351 = vpack.c.b16 %v1273, %v1271
        %v1352 = vpack.c.b16 %v1276, %v1274
        %v1353 = vpack.c.b16 %v1277, %v1275
        %v1354 = vpack.c.b16 %v1280, %v1278
        %v1355 = vpack.c.b16 %v1281, %v1279
        %v1356 = vpack.c.b16 %v1284, %v1282
        %v1357 = vpack.c.b16 %v1285, %v1283
        %v1358 = vpack.c.b16 %v1288, %v1286
        %v1359 = vpack.c.b16 %v1289, %v1287
        %v1360 = vpack.c.b16 %v1292, %v1290
        %v1361 = vpack.c.b16 %v1293, %v1291
        %v1362 = vpack.c.b16 %v1296, %v1294
        %v1363 = vpack.c.b16 %v1297, %v1295
        %v1364 = vpack.c.b16 %v1300, %v1298
        %v1365 = vpack.c.b16 %v1301, %v1299
        %1430 = vmatprep.subr.bf16.mxu0 %v1317
        %1431 = vmatpush1.bf16.msra.mxu0 %v1316
        %1432 = vmatprep.subr.bf16.mxu0 %v1315
        %1433 = vmatpush1.bf16.msra.mxu0 %v1314
        %1434 = vmatprep.subr.bf16.mxu0 %v1313
        %1435 = vmatpush1.bf16.msra.mxu0 %v1312
        %1436 = vmatprep.subr.bf16.mxu0 %v1311
        %1437 = vmatpush1.bf16.msra.mxu0 %v1310
        %1438 = vmatprep.subr.bf16.mxu0 %v1309
        %1439 = vmatpush1.bf16.msra.mxu0 %v1308
        %1440 = vmatprep.subr.bf16.mxu0 %v1307
        %1441 = vmatpush1.bf16.msra.mxu0 %v1306
        %1442 = vmatprep.subr.bf16.mxu0 %v1305
        %1443 = vmatpush1.bf16.msra.mxu0 %v1304
        %1444 = vmatprep.subr.bf16.mxu0 %v1303
        %1445 = vmatpush1.bf16.msra.mxu0 %v1302
        %1446 = vmatprep.subr.bf16.mxu0 %v1333
        %1447 = vmatpush2.bf16.msra.mxu0 %v1332
        %1448 = vmatprep.subr.bf16.mxu0 %v1331
        %1449 = vmatpush2.bf16.msra.mxu0 %v1330
        %1450 = vmatprep.subr.bf16.mxu0 %v1329
        %1451 = vmatpush2.bf16.msra.mxu0 %v1328
        %1452 = vmatprep.subr.bf16.mxu0 %v1327
        %1453 = vmatpush2.bf16.msra.mxu0 %v1326
        %1454 = vmatprep.subr.bf16.mxu0 %v1325
        %1455 = vmatpush2.bf16.msra.mxu0 %v1324
        %1456 = vmatprep.subr.bf16.mxu0 %v1323
        %1457 = vmatpush2.bf16.msra.mxu0 %v1322
        %1458 = vmatprep.subr.bf16.mxu0 %v1321
        %1459 = vmatpush2.bf16.msra.mxu0 %v1320
        %1460 = vmatprep.subr.bf16.mxu0 %v1319
        %1461 = vmatpush2.bf16.msra.mxu0 %v1318
        %1462 = vmatprep.mubr.bf16.mxu0 %v1095
        %1463 = vmatmul.mubr.bf16.gmra.mxu0 %v1094
        %v1464 = vpop.f32.mrf.mxu0
        %v1465 = vadd.f32 0.0, %v1464
        %v1466 = vpop.f32.mrf.mxu0
        %v1467 = vadd.f32 0.0, %v1466
        %v1468 = vpop.f32.mrf.mxu0
        %v1469 = vadd.f32 0.0, %v1468
        %v1470 = vpop.f32.mrf.mxu0
        %v1471 = vadd.f32 0.0, %v1470
        %1472 = vmatprep.mubr.bf16.mxu0 %v1099
        %1473 = vmatmul.mubr.bf16.gmra.mxu0 %v1098
        %v1474 = vpop.f32.mrf.mxu0
        %v1475 = vadd.f32 0.0, %v1474
        %v1476 = vpop.f32.mrf.mxu0
        %v1477 = vadd.f32 0.0, %v1476
        %v1478 = vpop.f32.mrf.mxu0
        %v1479 = vpop.f32.mrf.mxu0
        %1480 = vdwg.mxu0
        %1481 = vmatprep.subr.bf16.mxu0 %v1349
        %1482 = vmatpush1.bf16.msra.mxu0 %v1348
        %1483 = vmatprep.subr.bf16.mxu0 %v1347
        %1484 = vmatpush1.bf16.msra.mxu0 %v1346
        %1485 = vmatprep.subr.bf16.mxu0 %v1345
        %1486 = vmatpush1.bf16.msra.mxu0 %v1344
        %1487 = vmatprep.subr.bf16.mxu0 %v1343
        %1488 = vmatpush1.bf16.msra.mxu0 %v1342
        %1489 = vmatprep.subr.bf16.mxu0 %v1341
        %1490 = vmatpush1.bf16.msra.mxu0 %v1340
        %1491 = vmatprep.subr.bf16.mxu0 %v1339
        %1492 = vmatpush1.bf16.msra.mxu0 %v1338
        %1493 = vmatprep.subr.bf16.mxu0 %v1337
        %1494 = vmatpush1.bf16.msra.mxu0 %v1336
        %1495 = vmatprep.subr.bf16.mxu0 %v1335
        %1496 = vmatpush1.bf16.msra.mxu0 %v1334
        %1497 = vmatprep.subr.bf16.mxu0 %v1365
        %1498 = vmatpush2.bf16.msra.mxu0 %v1364
        %1499 = vmatprep.subr.bf16.mxu0 %v1363
        %1500 = vmatpush2.bf16.msra.mxu0 %v1362
        %1501 = vmatprep.subr.bf16.mxu0 %v1361
        %1502 = vmatpush2.bf16.msra.mxu0 %v1360
        %1503 = vmatprep.subr.bf16.mxu0 %v1359
        %1504 = vmatpush2.bf16.msra.mxu0 %v1358
        %1505 = vmatprep.subr.bf16.mxu0 %v1357
        %1506 = vmatpush2.bf16.msra.mxu0 %v1356
        %1507 = vmatprep.subr.bf16.mxu0 %v1355
        %1508 = vmatpush2.bf16.msra.mxu0 %v1354
        %1509 = vmatprep.subr.bf16.mxu0 %v1353
        %1510 = vmatpush2.bf16.msra.mxu0 %v1352
        %1511 = vmatprep.subr.bf16.mxu0 %v1351
        %1512 = vmatpush2.bf16.msra.mxu0 %v1350
        %1513 = vmatprep.mubr.bf16.mxu0 %v1097
        %1514 = vmatmul.mubr.bf16.gmra.mxu0 %v1096
        %v1515 = vpop.f32.mrf.mxu0
        %v1516 = vadd.f32 %v1465, %v1515
        %v1517 = vpop.f32.mrf.mxu0
        %v1518 = vadd.f32 %v1467, %v1517
        %v1519 = vpop.f32.mrf.mxu0
        %v1520 = vadd.f32 %v1469, %v1519
        %v1521 = vpop.f32.mrf.mxu0
        %v1522 = vadd.f32 %v1471, %v1521
        %1523 = vmatprep.mubr.bf16.mxu0 %v1101
        %1524 = vmatmul.mubr.bf16.gmra.mxu0 %v1100
        %v1525 = vpop.f32.mrf.mxu0
        %v1526 = vadd.f32 %v1475, %v1525
        %v1527 = vpop.f32.mrf.mxu0
        %v1528 = vadd.f32 %v1477, %v1527
        %v1529 = vpop.f32.mrf.mxu0
        %v1530 = vpop.f32.mrf.mxu0
        %1531 = vdwg.mxu0
        %v1532 = vld [vmem:[%s425] sm:$0xff]
        %v1533 = vld [vmem:[%s425 + $0x8] sm:$0xff]
        %v1534 = vld [vmem:[%s425 + $0x10] sm:$0xff]
        %v1535 = vld [vmem:[%s425 + $0x18] sm:$0xff]
        %v1536 = vld [vmem:[%s425 + $0x20] sm:$0xff]
        %v1537 = vld [vmem:[%s425 + $0x28] sm:$0xff]
        %v1538 = vld [vmem:[%s425 + $0x30] sm:$0xff]
        %v1539 = vld [vmem:[%s425 + $0x38] sm:$0xff]
        %v1540 = vld [vmem:[%s425 + $0x40] sm:$0xff]
        %v1541 = vld [vmem:[%s425 + $0x48] sm:$0xff]
        %v1542 = vld [vmem:[%s425 + $0x50] sm:$0xff]
        %v1543 = vld [vmem:[%s425 + $0x58] sm:$0xff]
        %v1544 = vld [vmem:[%s425 + $0x60] sm:$0xff]
        %v1545 = vld [vmem:[%s425 + $0x68] sm:$0xff]
        %v1546 = vld [vmem:[%s425 + $0x70] sm:$0xff]
        %v1547 = vld [vmem:[%s425 + $0x78] sm:$0xff]
        %v1548 = vld [vmem:[%s425 + $0x80] sm:$0xff]
        %v1549 = vld [vmem:[%s425 + $0x88] sm:$0xff]
        %v1550 = vld [vmem:[%s425 + $0x90] sm:$0xff]
        %v1551 = vld [vmem:[%s425 + $0x98] sm:$0xff]
        %v1552 = vld [vmem:[%s425 + $0xa0] sm:$0xff]
        %v1553 = vld [vmem:[%s425 + $0xa8] sm:$0xff]
        %v1554 = vld [vmem:[%s425 + $0xb0] sm:$0xff]
        %v1555 = vld [vmem:[%s425 + $0xb8] sm:$0xff]
        %v1556 = vld [vmem:[%s425 + $0xc0] sm:$0xff]
        %v1557 = vld [vmem:[%s425 + $0xc8] sm:$0xff]
        %v1558 = vld [vmem:[%s425 + $0xd0] sm:$0xff]
        %v1559 = vld [vmem:[%s425 + $0xd8] sm:$0xff]
        %v1560 = vld [vmem:[%s425 + $0xe0] sm:$0xff]
        %v1561 = vld [vmem:[%s425 + $0xe8] sm:$0xff]
        %v1562 = vld [vmem:[%s425 + $0xf0] sm:$0xff]
        %v1563 = vld [vmem:[%s425 + $0xf8] sm:$0xff]
        %v1564 = vld [vmem:[%s425 + $0x100] sm:$0xff]
        %v1565 = vld [vmem:[%s425 + $0x108] sm:$0xff]
        %v1566 = vld [vmem:[%s425 + $0x110] sm:$0xff]
        %v1567 = vld [vmem:[%s425 + $0x118] sm:$0xff]
        %v1568 = vld [vmem:[%s425 + $0x120] sm:$0xff]
        %v1569 = vld [vmem:[%s425 + $0x128] sm:$0xff]
        %v1570 = vld [vmem:[%s425 + $0x130] sm:$0xff]
        %v1571 = vld [vmem:[%s425 + $0x138] sm:$0xff]
        %v1572 = vld [vmem:[%s425 + $0x140] sm:$0xff]
        %v1573 = vld [vmem:[%s425 + $0x148] sm:$0xff]
        %v1574 = vld [vmem:[%s425 + $0x150] sm:$0xff]
        %v1575 = vld [vmem:[%s425 + $0x158] sm:$0xff]
        %v1576 = vld [vmem:[%s425 + $0x160] sm:$0xff]
        %v1577 = vld [vmem:[%s425 + $0x168] sm:$0xff]
        %v1578 = vld [vmem:[%s425 + $0x170] sm:$0xff]
        %v1579 = vld [vmem:[%s425 + $0x178] sm:$0xff]
        %v1580 = vld [vmem:[%s425 + $0x180] sm:$0xff]
        %v1581 = vld [vmem:[%s425 + $0x188] sm:$0xff]
        %v1582 = vld [vmem:[%s425 + $0x190] sm:$0xff]
        %v1583 = vld [vmem:[%s425 + $0x198] sm:$0xff]
        %v1584 = vld [vmem:[%s425 + $0x1a0] sm:$0xff]
        %v1585 = vld [vmem:[%s425 + $0x1a8] sm:$0xff]
        %v1586 = vld [vmem:[%s425 + $0x1b0] sm:$0xff]
        %v1587 = vld [vmem:[%s425 + $0x1b8] sm:$0xff]
        %v1588 = vld [vmem:[%s425 + $0x1c0] sm:$0xff]
        %v1589 = vld [vmem:[%s425 + $0x1c8] sm:$0xff]
        %v1590 = vld [vmem:[%s425 + $0x1d0] sm:$0xff]
        %v1591 = vld [vmem:[%s425 + $0x1d8] sm:$0xff]
        %v1592 = vld [vmem:[%s425 + $0x1e0] sm:$0xff]
        %v1593 = vld [vmem:[%s425 + $0x1e8] sm:$0xff]
        %v1594 = vld [vmem:[%s425 + $0x1f0] sm:$0xff]
        %v1595 = vld [vmem:[%s425 + $0x1f8] sm:$0xff]
        %v1602 = vunpack.c.l.b16 %v486
        %v1603 = vunpack.c.h.b16 %v486
        %v1604 = vunpack.c.l.b16 %v487
        %v1605 = vunpack.c.h.b16 %v487
        %v1606 = vunpack.c.l.b16 %v488
        %v1607 = vunpack.c.h.b16 %v488
        %v1608 = vunpack.c.l.b16 %v489
        %v1609 = vunpack.c.h.b16 %v489
        %v1610 = vunpack.c.l.b16 %v490
        %v1611 = vunpack.c.h.b16 %v490
        %v1612 = vunpack.c.l.b16 %v491
        %v1613 = vunpack.c.h.b16 %v491
        %v1614 = vpack.c.b16 %v1606, %v1602
        %v1615 = vpack.c.b16 %v1607, %v1603
        %v1616 = vpack.c.b16 %v1608, %v1604
        %v1617 = vpack.c.b16 %v1609, %v1605
        %v1618 = vpack.c.b16 %v1610, %v1610
        %v1619 = vpack.c.b16 %v1611, %v1611
        %v1620 = vpack.c.b16 %v1612, %v1612
        %v1621 = vpack.c.b16 %v1613, %v1613
        %v1694 = vunpack.c.l.b16 %v1532
        %v1695 = vunpack.c.h.b16 %v1532
        %v1696 = vunpack.c.l.b16 %v1533
        %v1697 = vunpack.c.h.b16 %v1533
        %v1698 = vunpack.c.l.b16 %v1534
        %v1699 = vunpack.c.h.b16 %v1534
        %v1700 = vunpack.c.l.b16 %v1535
        %v1701 = vunpack.c.h.b16 %v1535
        %v1702 = vunpack.c.l.b16 %v1536
        %v1703 = vunpack.c.h.b16 %v1536
        %v1704 = vunpack.c.l.b16 %v1537
        %v1705 = vunpack.c.h.b16 %v1537
        %v1706 = vunpack.c.l.b16 %v1538
        %v1707 = vunpack.c.h.b16 %v1538
        %v1708 = vunpack.c.l.b16 %v1539
        %v1709 = vunpack.c.h.b16 %v1539
        %v1710 = vunpack.c.l.b16 %v1540
        %v1711 = vunpack.c.h.b16 %v1540
        %v1712 = vunpack.c.l.b16 %v1541
        %v1713 = vunpack.c.h.b16 %v1541
        %v1714 = vunpack.c.l.b16 %v1542
        %v1715 = vunpack.c.h.b16 %v1542
        %v1716 = vunpack.c.l.b16 %v1543
        %v1717 = vunpack.c.h.b16 %v1543
        %v1718 = vunpack.c.l.b16 %v1544
        %v1719 = vunpack.c.h.b16 %v1544
        %v1720 = vunpack.c.l.b16 %v1545
        %v1721 = vunpack.c.h.b16 %v1545
        %v1722 = vunpack.c.l.b16 %v1546
        %v1723 = vunpack.c.h.b16 %v1546
        %v1724 = vunpack.c.l.b16 %v1547
        %v1725 = vunpack.c.h.b16 %v1547
        %v1726 = vunpack.c.l.b16 %v1548
        %v1727 = vunpack.c.h.b16 %v1548
        %v1728 = vunpack.c.l.b16 %v1549
        %v1729 = vunpack.c.h.b16 %v1549
        %v1730 = vunpack.c.l.b16 %v1550
        %v1731 = vunpack.c.h.b16 %v1550
        %v1732 = vunpack.c.l.b16 %v1551
        %v1733 = vunpack.c.h.b16 %v1551
        %v1734 = vunpack.c.l.b16 %v1552
        %v1735 = vunpack.c.h.b16 %v1552
        %v1736 = vunpack.c.l.b16 %v1553
        %v1737 = vunpack.c.h.b16 %v1553
        %v1738 = vunpack.c.l.b16 %v1554
        %v1739 = vunpack.c.h.b16 %v1554
        %v1740 = vunpack.c.l.b16 %v1555
        %v1741 = vunpack.c.h.b16 %v1555
        %v1742 = vunpack.c.l.b16 %v1556
        %v1743 = vunpack.c.h.b16 %v1556
        %v1744 = vunpack.c.l.b16 %v1557
        %v1745 = vunpack.c.h.b16 %v1557
        %v1746 = vunpack.c.l.b16 %v1558
        %v1747 = vunpack.c.h.b16 %v1558
        %v1748 = vunpack.c.l.b16 %v1559
        %v1749 = vunpack.c.h.b16 %v1559
        %v1750 = vunpack.c.l.b16 %v1560
        %v1751 = vunpack.c.h.b16 %v1560
        %v1752 = vunpack.c.l.b16 %v1561
        %v1753 = vunpack.c.h.b16 %v1561
        %v1754 = vunpack.c.l.b16 %v1562
        %v1755 = vunpack.c.h.b16 %v1562
        %v1756 = vunpack.c.l.b16 %v1563
        %v1757 = vunpack.c.h.b16 %v1563
        %v1758 = vunpack.c.l.b16 %v1564
        %v1759 = vunpack.c.h.b16 %v1564
        %v1760 = vunpack.c.l.b16 %v1565
        %v1761 = vunpack.c.h.b16 %v1565
        %v1762 = vunpack.c.l.b16 %v1566
        %v1763 = vunpack.c.h.b16 %v1566
        %v1764 = vunpack.c.l.b16 %v1567
        %v1765 = vunpack.c.h.b16 %v1567
        %v1766 = vunpack.c.l.b16 %v1568
        %v1767 = vunpack.c.h.b16 %v1568
        %v1768 = vunpack.c.l.b16 %v1569
        %v1769 = vunpack.c.h.b16 %v1569
        %v1770 = vunpack.c.l.b16 %v1570
        %v1771 = vunpack.c.h.b16 %v1570
        %v1772 = vunpack.c.l.b16 %v1571
        %v1773 = vunpack.c.h.b16 %v1571
        %v1774 = vunpack.c.l.b16 %v1572
        %v1775 = vunpack.c.h.b16 %v1572
        %v1776 = vunpack.c.l.b16 %v1573
        %v1777 = vunpack.c.h.b16 %v1573
        %v1778 = vunpack.c.l.b16 %v1574
        %v1779 = vunpack.c.h.b16 %v1574
        %v1780 = vunpack.c.l.b16 %v1575
        %v1781 = vunpack.c.h.b16 %v1575
        %v1782 = vunpack.c.l.b16 %v1576
        %v1783 = vunpack.c.h.b16 %v1576
        %v1784 = vunpack.c.l.b16 %v1577
        %v1785 = vunpack.c.h.b16 %v1577
        %v1786 = vunpack.c.l.b16 %v1578
        %v1787 = vunpack.c.h.b16 %v1578
        %v1788 = vunpack.c.l.b16 %v1579
        %v1789 = vunpack.c.h.b16 %v1579
        %v1790 = vunpack.c.l.b16 %v1580
        %v1791 = vunpack.c.h.b16 %v1580
        %v1792 = vunpack.c.l.b16 %v1581
        %v1793 = vunpack.c.h.b16 %v1581
        %v1794 = vunpack.c.l.b16 %v1582
        %v1795 = vunpack.c.h.b16 %v1582
        %v1796 = vunpack.c.l.b16 %v1583
        %v1797 = vunpack.c.h.b16 %v1583
        %v1798 = vunpack.c.l.b16 %v1584
        %v1799 = vunpack.c.h.b16 %v1584
        %v1800 = vunpack.c.l.b16 %v1585
        %v1801 = vunpack.c.h.b16 %v1585
        %v1802 = vunpack.c.l.b16 %v1586
        %v1803 = vunpack.c.h.b16 %v1586
        %v1804 = vunpack.c.l.b16 %v1587
        %v1805 = vunpack.c.h.b16 %v1587
        %v1806 = vunpack.c.l.b16 %v1588
        %v1807 = vunpack.c.h.b16 %v1588
        %v1808 = vunpack.c.l.b16 %v1589
        %v1809 = vunpack.c.h.b16 %v1589
        %v1810 = vunpack.c.l.b16 %v1590
        %v1811 = vunpack.c.h.b16 %v1590
        %v1812 = vunpack.c.l.b16 %v1591
        %v1813 = vunpack.c.h.b16 %v1591
        %v1814 = vunpack.c.l.b16 %v1592
        %v1815 = vunpack.c.h.b16 %v1592
        %v1816 = vunpack.c.l.b16 %v1593
        %v1817 = vunpack.c.h.b16 %v1593
        %v1818 = vunpack.c.l.b16 %v1594
        %v1819 = vunpack.c.h.b16 %v1594
        %v1820 = vunpack.c.l.b16 %v1595
        %v1821 = vunpack.c.h.b16 %v1595
        %v1822 = vpack.c.b16 %v1696, %v1694
        %v1823 = vpack.c.b16 %v1697, %v1695
        %v1824 = vpack.c.b16 %v1700, %v1698
        %v1825 = vpack.c.b16 %v1701, %v1699
        %v1826 = vpack.c.b16 %v1704, %v1702
        %v1827 = vpack.c.b16 %v1705, %v1703
        %v1828 = vpack.c.b16 %v1708, %v1706
        %v1829 = vpack.c.b16 %v1709, %v1707
        %v1830 = vpack.c.b16 %v1712, %v1710
        %v1831 = vpack.c.b16 %v1713, %v1711
        %v1832 = vpack.c.b16 %v1716, %v1714
        %v1833 = vpack.c.b16 %v1717, %v1715
        %v1834 = vpack.c.b16 %v1720, %v1718
        %v1835 = vpack.c.b16 %v1721, %v1719
        %v1836 = vpack.c.b16 %v1724, %v1722
        %v1837 = vpack.c.b16 %v1725, %v1723
        %v1838 = vpack.c.b16 %v1728, %v1726
        %v1839 = vpack.c.b16 %v1729, %v1727
        %v1840 = vpack.c.b16 %v1732, %v1730
        %v1841 = vpack.c.b16 %v1733, %v1731
        %v1842 = vpack.c.b16 %v1736, %v1734
        %v1843 = vpack.c.b16 %v1737, %v1735
        %v1844 = vpack.c.b16 %v1740, %v1738
        %v1845 = vpack.c.b16 %v1741, %v1739
        %v1846 = vpack.c.b16 %v1744, %v1742
        %v1847 = vpack.c.b16 %v1745, %v1743
        %v1848 = vpack.c.b16 %v1748, %v1746
        %v1849 = vpack.c.b16 %v1749, %v1747
        %v1850 = vpack.c.b16 %v1752, %v1750
        %v1851 = vpack.c.b16 %v1753, %v1751
        %v1852 = vpack.c.b16 %v1756, %v1754
        %v1853 = vpack.c.b16 %v1757, %v1755
        %v1854 = vpack.c.b16 %v1760, %v1758
        %v1855 = vpack.c.b16 %v1761, %v1759
        %v1856 = vpack.c.b16 %v1764, %v1762
        %v1857 = vpack.c.b16 %v1765, %v1763
        %v1858 = vpack.c.b16 %v1768, %v1766
        %v1859 = vpack.c.b16 %v1769, %v1767
        %v1860 = vpack.c.b16 %v1772, %v1770
        %v1861 = vpack.c.b16 %v1773, %v1771
        %v1862 = vpack.c.b16 %v1776, %v1774
        %v1863 = vpack.c.b16 %v1777, %v1775
        %v1864 = vpack.c.b16 %v1780, %v1778
        %v1865 = vpack.c.b16 %v1781, %v1779
        %v1866 = vpack.c.b16 %v1784, %v1782
        %v1867 = vpack.c.b16 %v1785, %v1783
        %v1868 = vpack.c.b16 %v1788, %v1786
        %v1869 = vpack.c.b16 %v1789, %v1787
        %v1870 = vpack.c.b16 %v1792, %v1790
        %v1871 = vpack.c.b16 %v1793, %v1791
        %v1872 = vpack.c.b16 %v1796, %v1794
        %v1873 = vpack.c.b16 %v1797, %v1795
        %v1874 = vpack.c.b16 %v1800, %v1798
        %v1875 = vpack.c.b16 %v1801, %v1799
        %v1876 = vpack.c.b16 %v1804, %v1802
        %v1877 = vpack.c.b16 %v1805, %v1803
        %v1878 = vpack.c.b16 %v1808, %v1806
        %v1879 = vpack.c.b16 %v1809, %v1807
        %v1880 = vpack.c.b16 %v1812, %v1810
        %v1881 = vpack.c.b16 %v1813, %v1811
        %v1882 = vpack.c.b16 %v1816, %v1814
        %v1883 = vpack.c.b16 %v1817, %v1815
        %v1884 = vpack.c.b16 %v1820, %v1818
        %v1885 = vpack.c.b16 %v1821, %v1819
        %1950 = vmatprep.subr.bf16.mxu0 %v1837
        %1951 = vmatpush1.bf16.msra.mxu0 %v1836
        %1952 = vmatprep.subr.bf16.mxu0 %v1835
        %1953 = vmatpush1.bf16.msra.mxu0 %v1834
        %1954 = vmatprep.subr.bf16.mxu0 %v1833
        %1955 = vmatpush1.bf16.msra.mxu0 %v1832
        %1956 = vmatprep.subr.bf16.mxu0 %v1831
        %1957 = vmatpush1.bf16.msra.mxu0 %v1830
        %1958 = vmatprep.subr.bf16.mxu0 %v1829
        %1959 = vmatpush1.bf16.msra.mxu0 %v1828
        %1960 = vmatprep.subr.bf16.mxu0 %v1827
        %1961 = vmatpush1.bf16.msra.mxu0 %v1826
        %1962 = vmatprep.subr.bf16.mxu0 %v1825
        %1963 = vmatpush1.bf16.msra.mxu0 %v1824
        %1964 = vmatprep.subr.bf16.mxu0 %v1823
        %1965 = vmatpush1.bf16.msra.mxu0 %v1822
        %1966 = vmatprep.subr.bf16.mxu0 %v1853
        %1967 = vmatpush2.bf16.msra.mxu0 %v1852
        %1968 = vmatprep.subr.bf16.mxu0 %v1851
        %1969 = vmatpush2.bf16.msra.mxu0 %v1850
        %1970 = vmatprep.subr.bf16.mxu0 %v1849
        %1971 = vmatpush2.bf16.msra.mxu0 %v1848
        %1972 = vmatprep.subr.bf16.mxu0 %v1847
        %1973 = vmatpush2.bf16.msra.mxu0 %v1846
        %1974 = vmatprep.subr.bf16.mxu0 %v1845
        %1975 = vmatpush2.bf16.msra.mxu0 %v1844
        %1976 = vmatprep.subr.bf16.mxu0 %v1843
        %1977 = vmatpush2.bf16.msra.mxu0 %v1842
        %1978 = vmatprep.subr.bf16.mxu0 %v1841
        %1979 = vmatpush2.bf16.msra.mxu0 %v1840
        %1980 = vmatprep.subr.bf16.mxu0 %v1839
        %1981 = vmatpush2.bf16.msra.mxu0 %v1838
        %1982 = vmatprep.mubr.bf16.mxu0 %v1615
        %1983 = vmatmul.mubr.bf16.gmra.mxu0 %v1614
        %v1984 = vpop.f32.mrf.mxu0
        %v1985 = vadd.f32 0.0, %v1984
        %v1986 = vpop.f32.mrf.mxu0
        %v1987 = vadd.f32 0.0, %v1986
        %v1988 = vpop.f32.mrf.mxu0
        %v1989 = vadd.f32 0.0, %v1988
        %v1990 = vpop.f32.mrf.mxu0
        %v1991 = vadd.f32 0.0, %v1990
        %1992 = vmatprep.mubr.bf16.mxu0 %v1619
        %1993 = vmatmul.mubr.bf16.gmra.mxu0 %v1618
        %v1994 = vpop.f32.mrf.mxu0
        %v1995 = vadd.f32 0.0, %v1994
        %v1996 = vpop.f32.mrf.mxu0
        %v1997 = vadd.f32 0.0, %v1996
        %v1998 = vpop.f32.mrf.mxu0
        %v1999 = vpop.f32.mrf.mxu0
        %2000 = vdwg.mxu0
        %2001 = vmatprep.subr.bf16.mxu0 %v1869
        %2002 = vmatpush1.bf16.msra.mxu0 %v1868
        %2003 = vmatprep.subr.bf16.mxu0 %v1867
        %2004 = vmatpush1.bf16.msra.mxu0 %v1866
        %2005 = vmatprep.subr.bf16.mxu0 %v1865
        %2006 = vmatpush1.bf16.msra.mxu0 %v1864
        %2007 = vmatprep.subr.bf16.mxu0 %v1863
        %2008 = vmatpush1.bf16.msra.mxu0 %v1862
        %2009 = vmatprep.subr.bf16.mxu0 %v1861
        %2010 = vmatpush1.bf16.msra.mxu0 %v1860
        %2011 = vmatprep.subr.bf16.mxu0 %v1859
        %2012 = vmatpush1.bf16.msra.mxu0 %v1858
        %2013 = vmatprep.subr.bf16.mxu0 %v1857
        %2014 = vmatpush1.bf16.msra.mxu0 %v1856
        %2015 = vmatprep.subr.bf16.mxu0 %v1855
        %2016 = vmatpush1.bf16.msra.mxu0 %v1854
        %2017 = vmatprep.subr.bf16.mxu0 %v1885
        %2018 = vmatpush2.bf16.msra.mxu0 %v1884
        %2019 = vmatprep.subr.bf16.mxu0 %v1883
        %2020 = vmatpush2.bf16.msra.mxu0 %v1882
        %2021 = vmatprep.subr.bf16.mxu0 %v1881
        %2022 = vmatpush2.bf16.msra.mxu0 %v1880
        %2023 = vmatprep.subr.bf16.mxu0 %v1879
        %2024 = vmatpush2.bf16.msra.mxu0 %v1878
        %2025 = vmatprep.subr.bf16.mxu0 %v1877
        %2026 = vmatpush2.bf16.msra.mxu0 %v1876
        %2027 = vmatprep.subr.bf16.mxu0 %v1875
        %2028 = vmatpush2.bf16.msra.mxu0 %v1874
        %2029 = vmatprep.subr.bf16.mxu0 %v1873
        %2030 = vmatpush2.bf16.msra.mxu0 %v1872
        %2031 = vmatprep.subr.bf16.mxu0 %v1871
        %2032 = vmatpush2.bf16.msra.mxu0 %v1870
        %2033 = vmatprep.mubr.bf16.mxu0 %v1617
        %2034 = vmatmul.mubr.bf16.gmra.mxu0 %v1616
        %v2035 = vpop.f32.mrf.mxu0
        %v2036 = vadd.f32 %v1985, %v2035
        %v2037 = vpop.f32.mrf.mxu0
        %v2038 = vadd.f32 %v1987, %v2037
        %v2039 = vpop.f32.mrf.mxu0
        %v2040 = vadd.f32 %v1989, %v2039
        %v2041 = vpop.f32.mrf.mxu0
        %v2042 = vadd.f32 %v1991, %v2041
        %2043 = vmatprep.mubr.bf16.mxu0 %v1621
        %2044 = vmatmul.mubr.bf16.gmra.mxu0 %v1620
        %v2045 = vpop.f32.mrf.mxu0
        %v2046 = vadd.f32 %v1995, %v2045
        %v2047 = vpop.f32.mrf.mxu0
        %v2048 = vadd.f32 %v1997, %v2047
        %v2049 = vpop.f32.mrf.mxu0
        %v2050 = vpop.f32.mrf.mxu0
        %2051 = vdwg.mxu0
        %v2052 = vmul.f32 %v996, 0.125
        %v2053 = vmul.f32 %v998, 0.125
        %v2054 = vmul.f32 %v1000, 0.125
        %v2055 = vmul.f32 %v1002, 0.125
        %v2056 = vmul.f32 %v1006, 0.125
        %v2057 = vmul.f32 %v1008, 0.125
        %v2058 = vlaneseq
        %v2059 = vand.u32 %v2058, 127
        %v2060 = vld [vmem:[#allocation13] sm:$0xff]
        %v2061 = vld [vmem:[#allocation13 + $0x8] sm:$0xff]
        %v2062 = vld [vmem:[#allocation13 + $0x10] sm:$0xff]
        %vm2063 = vcmp.lt.s32.totalorder %v2059, 20
        %v2064 = vsel %vm2063, 0.0, -1e+30
        %v2065 = vadd.f32 %v2060, %v2064
        %v2066 = vadd.f32 %v2061, %v2064
        %v2067 = vadd.f32 %v2062, %v2064
        %vm2068 = vcmask 523264
        %v2070 = vsel %vm2068, %v2052, 0
        %v2073 = vsel %vm2068, %v2054, 0
        %v2076 = vsel %vm2068, %v2056, 0
        %v2079 = vsel %vm2068, %v1516, 0
        %v2082 = vsel %vm2068, %v1520, 0
        %v2085 = vsel %vm2068, %v1526, 0
        %2087 = vmatprep.subr.mxu0 0.0
        %2088 = vmatpush1.xpose.msra.mxu0 0.0
        %2089 = vmatprep.subr.mxu0 0.0
        %2090 = vmatpush1.xpose.msra.mxu0 0.0
        %2091 = vmatprep.subr.mxu0 0.0
        %2092 = vmatpush1.xpose.msra.mxu0 0.0
        %2093 = vmatprep.subr.mxu0 0.0
        %2094 = vmatpush1.xpose.msra.mxu0 0.0
        %2095 = vmatprep.subr.mxu0 0.0
        %2096 = vmatpush1.xpose.msra.mxu0 0.0
        %2097 = vmatprep.subr.mxu0 0.0
        %2098 = vmatpush1.xpose.msra.mxu0 0.0
        %2099 = vmatprep.subr.mxu0 0.0
        %2100 = vmatpush1.xpose.msra.mxu0 0.0
        %2101 = vmatprep.subr.mxu0 0.0
        %2102 = vmatpush1.xpose.msra.mxu0 0.0
        %2103 = vmatprep.subr.mxu0 0.0
        %2104 = vmatpush1.xpose.msra.mxu0 0.0
        %2105 = vmatprep.subr.mxu0 0.0
        %2106 = vmatpush1.xpose.msra.mxu0 0.0
        %2107 = vmatprep.subr.mxu0 0.0
        %2108 = vmatpush1.xpose.msra.mxu0 0.0
        %2109 = vmatprep.subr.mxu0 0.0
        %2110 = vmatpush1.xpose.msra.mxu0 0.0
        %2111 = vmatprep.subr.mxu0 0.0
        %2112 = vmatpush1.xpose.msra.mxu0 0.0
        %2113 = vmatprep.subr.mxu0 0.0
        %2114 = vmatpush1.xpose.msra.mxu0 %v2085
        %2115 = vmatprep.subr.mxu0 0.0
        %2116 = vmatpush1.xpose.msra.mxu0 %v2082
        %2117 = vmatprep.subr.mxu0 0.0
        %2118 = vmatpush1.xpose.msra.mxu0 %v2079
        %2119 = vmatprep.subr.mxu0 0.0
        %2120 = vmatpush2.xpose.msra.mxu0 0.0
        %2121 = vmatprep.subr.mxu0 0.0
        %2122 = vmatpush2.xpose.msra.mxu0 0.0
        %2123 = vmatprep.subr.mxu0 0.0
        %2124 = vmatpush2.xpose.msra.mxu0 0.0
        %2125 = vmatprep.subr.mxu0 0.0
        %2126 = vmatpush2.xpose.msra.mxu0 0.0
        %2127 = vmatprep.subr.mxu0 0.0
        %2128 = vmatpush2.xpose.msra.mxu0 0.0
        %2129 = vmatprep.subr.mxu0 0.0
        %2130 = vmatpush2.xpose.msra.mxu0 0.0
        %2131 = vmatprep.subr.mxu0 0.0
        %2132 = vmatpush2.xpose.msra.mxu0 0.0
        %2133 = vmatprep.subr.mxu0 0.0
        %2134 = vmatpush2.xpose.msra.mxu0 0.0
        %2135 = vmatprep.subr.mxu0 0.0
        %2136 = vmatpush2.xpose.msra.mxu0 0.0
        %2137 = vmatprep.subr.mxu0 0.0
        %2138 = vmatpush2.xpose.msra.mxu0 0.0
        %2139 = vmatprep.subr.mxu0 0.0
        %2140 = vmatpush2.xpose.msra.mxu0 0.0
        %2141 = vmatprep.subr.mxu0 0.0
        %2142 = vmatpush2.xpose.msra.mxu0 0.0
        %2143 = vmatprep.subr.mxu0 0.0
        %2144 = vmatpush2.xpose.msra.mxu0 0.0
        %2145 = vmatprep.subr.mxu0 0.0
        %2146 = vmatpush2.xpose.msra.mxu0 0.0
        %2147 = vmatprep.subr.mxu0 0.0
        %2148 = vmatpush2.xpose.msra.mxu0 0.0
        %2149 = vmatprep.subr.mxu0 0.0
        %2150 = vmatpush2.xpose.msra.mxu0 0.0
        %2151 = vmatprep.mubr.f32.mxu0 0.0
        %2152 = vmatmul.mubr.f32.gmra.mxu0 %v2070
        %v2153 = vpop.f32.mrf.mxu0
        %v2154 = vadd.f32 %v2065, %v2153
        %v2155 = vpop.f32.mrf.mxu0
        %2156 = vmatprep.mubr.f32.mxu0 0.0
        %2157 = vmatmul.mubr.f32.gmra.mxu0 %v2073
        %v2158 = vpop.f32.mrf.mxu0
        %v2159 = vadd.f32 %v2066, %v2158
        %v2160 = vpop.f32.mrf.mxu0
        %2161 = vmatprep.mubr.f32.mxu0 0.0
        %2162 = vmatmul.mubr.f32.gmra.mxu0 %v2076
        %v2163 = vpop.f32.mrf.mxu0
        %v2164 = vadd.f32 %v2067, %v2163
        %v2165 = vpop.f32.mrf.mxu0
        %2166 = vdwg.mxu0
        %vm2167 = vcmask 195584
        %v2168 = vsel %vm2167, %v2154, -inf
        %2169 = vmax.xlane.f32.xlu0 %v2168
        %v2170 = vpop.xlane.xlu0 %2169
        %v2171 = vsel %vm2167, %v2159, -inf
        %2172 = vmax.xlane.f32.xlu0 %v2171
        %v2173 = vpop.xlane.xlu0 %2172
        %v2174 = vsel %vm2167, %v2164, -inf
        %2175 = vmax.xlane.f32.xlu0 %v2174
        %v2176 = vpop.xlane.xlu0 %2175
        %v2177 = vsub.f32 %v2154, %v2170
        %v2178 = vsub.f32 %v2159, %v2173
        %v2179 = vsub.f32 %v2164, %v2176
        %v2180 = vmul.f32 %v2177, 1.442695
        %v2181 = vpow.pop %v2180
        %v2182 = vmul.f32 %v2178, 1.442695
        %v2183 = vpow.pop %v2182
        %v2184 = vmul.f32 %v2179, 1.442695
        %v2185 = vpow.pop %v2184
        %v2186 = vsel %vm2167, %v2181, 0.0
        %2187 = vadd.xlane.f32.xlu0 %v2186
        %v2188 = vpop.xlane.xlu0 %2187
        %v2189 = vsel %vm2167, %v2183, 0.0
        %2190 = vadd.xlane.f32.xlu0 %v2189
        %v2191 = vpop.xlane.xlu0 %2190
        %v2192 = vsel %vm2167, %v2185, 0.0
        %2193 = vadd.xlane.f32.xlu0 %v2192
        %v2194 = vpop.xlane.xlu0 %2193
        %v2195 = vrcp.pop %v2188
        %v2196 = vmul.f32 %v2181, %v2195
        %v2197 = vrcp.pop %v2191
        %v2198 = vmul.f32 %v2183, %v2197
        %v2199 = vrcp.pop %v2194
        %v2200 = vmul.f32 %v2185, %v2199
        %v2202 = vsel %vm2167, %v2196, 0
        %v2205 = vsel %vm2167, %v2198, 0
        %v2208 = vsel %vm2167, %v2200, 0
        %2210 = vmatprep.subr.mxu0 0.0
        %2211 = vmatpush1.msra.mxu0 0.0
        %2212 = vmatprep.subr.mxu0 0.0
        %2213 = vmatpush1.msra.mxu0 0.0
        %2214 = vmatprep.subr.mxu0 0.0
        %2215 = vmatpush1.msra.mxu0 0.0
        %2216 = vmatprep.subr.mxu0 0.0
        %2217 = vmatpush1.msra.mxu0 0.0
        %2218 = vmatprep.subr.mxu0 0.0
        %2219 = vmatpush1.msra.mxu0 0.0
        %2220 = vmatprep.subr.mxu0 0.0
        %2221 = vmatpush1.msra.mxu0 0.0
        %2222 = vmatprep.subr.mxu0 0.0
        %2223 = vmatpush1.msra.mxu0 0.0
        %2224 = vmatprep.subr.mxu0 0.0
        %2225 = vmatpush1.msra.mxu0 0.0
        %2226 = vmatprep.subr.mxu0 0.0
        %2227 = vmatpush1.msra.mxu0 0.0
        %2228 = vmatprep.subr.mxu0 0.0
        %2229 = vmatpush1.msra.mxu0 0.0
        %2230 = vmatprep.subr.mxu0 0.0
        %2231 = vmatpush1.msra.mxu0 0.0
        %2232 = vmatprep.subr.mxu0 0.0
        %2233 = vmatpush1.msra.mxu0 0.0
        %2234 = vmatprep.subr.mxu0 0.0
        %2235 = vmatpush1.msra.mxu0 0.0
        %2236 = vmatprep.subr.mxu0 0.0
        %2237 = vmatpush1.msra.mxu0 %v2046
        %2238 = vmatprep.subr.mxu0 0.0
        %2239 = vmatpush1.msra.mxu0 %v2040
        %2240 = vmatprep.subr.mxu0 0.0
        %2241 = vmatpush1.msra.mxu0 %v2036
        %2242 = vmatprep.subr.mxu0 0.0
        %2243 = vmatpush2.msra.mxu0 0.0
        %2244 = vmatprep.subr.mxu0 0.0
        %2245 = vmatpush2.msra.mxu0 0.0
        %2246 = vmatprep.subr.mxu0 0.0
        %2247 = vmatpush2.msra.mxu0 0.0
        %2248 = vmatprep.subr.mxu0 0.0
        %2249 = vmatpush2.msra.mxu0 0.0
        %2250 = vmatprep.subr.mxu0 0.0
        %2251 = vmatpush2.msra.mxu0 0.0
        %2252 = vmatprep.subr.mxu0 0.0
        %2253 = vmatpush2.msra.mxu0 0.0
        %2254 = vmatprep.subr.mxu0 0.0
        %2255 = vmatpush2.msra.mxu0 0.0
        %2256 = vmatprep.subr.mxu0 0.0
        %2257 = vmatpush2.msra.mxu0 0.0
        %2258 = vmatprep.subr.mxu0 0.0
        %2259 = vmatpush2.msra.mxu0 0.0
        %2260 = vmatprep.subr.mxu0 0.0
        %2261 = vmatpush2.msra.mxu0 0.0
        %2262 = vmatprep.subr.mxu0 0.0
        %2263 = vmatpush2.msra.mxu0 0.0
        %2264 = vmatprep.subr.mxu0 0.0
        %2265 = vmatpush2.msra.mxu0 0.0
        %2266 = vmatprep.subr.mxu0 0.0
        %2267 = vmatpush2.msra.mxu0 0.0
        %2268 = vmatprep.subr.mxu0 0.0
        %2269 = vmatpush2.msra.mxu0 0.0
        %2270 = vmatprep.subr.mxu0 0.0
        %2271 = vmatpush2.msra.mxu0 0.0
        %2272 = vmatprep.subr.mxu0 0.0
        %2273 = vmatpush2.msra.mxu0 0.0
        %2274 = vmatprep.mubr.f32.mxu0 0.0
        %2275 = vmatmul.mubr.f32.gmra.mxu0 %v2202
        %v2276 = vpop.f32.mrf.mxu0
        %v2277 = vadd.f32 0.0, %v2276
        %v2278 = vpop.f32.mrf.mxu0
        %2279 = vmatprep.mubr.f32.mxu0 0.0
        %2280 = vmatmul.mubr.f32.gmra.mxu0 %v2205
        %v2281 = vpop.f32.mrf.mxu0
        %v2282 = vadd.f32 0.0, %v2281
        %v2283 = vpop.f32.mrf.mxu0
        %2284 = vmatprep.mubr.f32.mxu0 0.0
        %2285 = vmatmul.mubr.f32.gmra.mxu0 %v2208
        %v2286 = vpop.f32.mrf.mxu0
        %v2287 = vadd.f32 0.0, %v2286
        %v2288 = vpop.f32.mrf.mxu0
        %2289 = vdwg.mxu0
        %2290 = vst.msk [vmem:[%s469] sm:$0xff] %vm2068, %v2277
        %2291 = vst.msk [vmem:[%s469 + $0x10] sm:$0xff] %vm2068, %v2282
        %2292 = vst.msk [vmem:[%s469 + $0x20] sm:$0xff] %vm2068, %v2287
        %2293 = vrot.lane.b32.xlu0 %v2052, 64
        %v2294 = vpop.permute.xlu0 %2293
        %2295 = vrot.lane.b32.xlu0 %v2054, 64
        %v2296 = vpop.permute.xlu0 %2295
        %2297 = vrot.lane.b32.xlu0 %v2056, 64
        %v2298 = vpop.permute.xlu0 %2297
        %2299 = vrot.lane.b32.xlu0 %v1516, 64
        %v2300 = vpop.permute.xlu0 %2299
        %2301 = vrot.lane.b32.xlu0 %v1520, 64
        %v2302 = vpop.permute.xlu0 %2301
        %2303 = vrot.lane.b32.xlu0 %v1526, 64
        %v2304 = vpop.permute.xlu0 %2303
        %v2305 = vsel %vm2068, %v2294, 0
        %v2307 = vsel %vm2068, %v2296, 0
        %v2309 = vsel %vm2068, %v2298, 0
        %v2311 = vsel %vm2068, %v2300, 0
        %v2313 = vsel %vm2068, %v2302, 0
        %v2315 = vsel %vm2068, %v2304, 0
        %2317 = vmatprep.subr.mxu0 0.0
        %2318 = vmatpush1.xpose.msra.mxu0 0.0
        %2319 = vmatprep.subr.mxu0 0.0
        %2320 = vmatpush1.xpose.msra.mxu0 0.0
        %2321 = vmatprep.subr.mxu0 0.0
        %2322 = vmatpush1.xpose.msra.mxu0 0.0
        %2323 = vmatprep.subr.mxu0 0.0
        %2324 = vmatpush1.xpose.msra.mxu0 0.0
        %2325 = vmatprep.subr.mxu0 0.0
        %2326 = vmatpush1.xpose.msra.mxu0 0.0
        %2327 = vmatprep.subr.mxu0 0.0
        %2328 = vmatpush1.xpose.msra.mxu0 0.0
        %2329 = vmatprep.subr.mxu0 0.0
        %2330 = vmatpush1.xpose.msra.mxu0 0.0
        %2331 = vmatprep.subr.mxu0 0.0
        %2332 = vmatpush1.xpose.msra.mxu0 0.0
        %2333 = vmatprep.subr.mxu0 0.0
        %2334 = vmatpush1.xpose.msra.mxu0 0.0
        %2335 = vmatprep.subr.mxu0 0.0
        %2336 = vmatpush1.xpose.msra.mxu0 0.0
        %2337 = vmatprep.subr.mxu0 0.0
        %2338 = vmatpush1.xpose.msra.mxu0 0.0
        %2339 = vmatprep.subr.mxu0 0.0
        %2340 = vmatpush1.xpose.msra.mxu0 0.0
        %2341 = vmatprep.subr.mxu0 0.0
        %2342 = vmatpush1.xpose.msra.mxu0 0.0
        %2343 = vmatprep.subr.mxu0 0.0
        %2344 = vmatpush1.xpose.msra.mxu0 %v2315
        %2345 = vmatprep.subr.mxu0 0.0
        %2346 = vmatpush1.xpose.msra.mxu0 %v2313
        %2347 = vmatprep.subr.mxu0 0.0
        %2348 = vmatpush1.xpose.msra.mxu0 %v2311
        %2349 = vmatprep.subr.mxu0 0.0
        %2350 = vmatpush2.xpose.msra.mxu0 0.0
        %2351 = vmatprep.subr.mxu0 0.0
        %2352 = vmatpush2.xpose.msra.mxu0 0.0
        %2353 = vmatprep.subr.mxu0 0.0
        %2354 = vmatpush2.xpose.msra.mxu0 0.0
        %2355 = vmatprep.subr.mxu0 0.0
        %2356 = vmatpush2.xpose.msra.mxu0 0.0
        %2357 = vmatprep.subr.mxu0 0.0
        %2358 = vmatpush2.xpose.msra.mxu0 0.0
        %2359 = vmatprep.subr.mxu0 0.0
        %2360 = vmatpush2.xpose.msra.mxu0 0.0
        %2361 = vmatprep.subr.mxu0 0.0
        %2362 = vmatpush2.xpose.msra.mxu0 0.0
        %2363 = vmatprep.subr.mxu0 0.0
        %2364 = vmatpush2.xpose.msra.mxu0 0.0
        %2365 = vmatprep.subr.mxu0 0.0
        %2366 = vmatpush2.xpose.msra.mxu0 0.0
        %2367 = vmatprep.subr.mxu0 0.0
        %2368 = vmatpush2.xpose.msra.mxu0 0.0
        %2369 = vmatprep.subr.mxu0 0.0
        %2370 = vmatpush2.xpose.msra.mxu0 0.0
        %2371 = vmatprep.subr.mxu0 0.0
        %2372 = vmatpush2.xpose.msra.mxu0 0.0
        %2373 = vmatprep.subr.mxu0 0.0
        %2374 = vmatpush2.xpose.msra.mxu0 0.0
        %2375 = vmatprep.subr.mxu0 0.0
        %2376 = vmatpush2.xpose.msra.mxu0 0.0
        %2377 = vmatprep.subr.mxu0 0.0
        %2378 = vmatpush2.xpose.msra.mxu0 0.0
        %2379 = vmatprep.subr.mxu0 0.0
        %2380 = vmatpush2.xpose.msra.mxu0 0.0
        %2381 = vmatprep.mubr.f32.mxu0 0.0
        %2382 = vmatmul.mubr.f32.gmra.mxu0 %v2305
        %v2383 = vpop.f32.mrf.mxu0
        %v2384 = vadd.f32 %v2065, %v2383
        %v2385 = vpop.f32.mrf.mxu0
        %2386 = vmatprep.mubr.f32.mxu0 0.0
        %2387 = vmatmul.mubr.f32.gmra.mxu0 %v2307
        %v2388 = vpop.f32.mrf.mxu0
        %v2389 = vadd.f32 %v2066, %v2388
        %v2390 = vpop.f32.mrf.mxu0
        %2391 = vmatprep.mubr.f32.mxu0 0.0
        %2392 = vmatmul.mubr.f32.gmra.mxu0 %v2309
        %v2393 = vpop.f32.mrf.mxu0
        %v2394 = vadd.f32 %v2067, %v2393
        %v2395 = vpop.f32.mrf.mxu0
        %2396 = vdwg.mxu0
        %v2397 = vsel %vm2167, %v2384, -inf
        %2398 = vmax.xlane.f32.xlu0 %v2397
        %v2399 = vpop.xlane.xlu0 %2398
        %v2400 = vsel %vm2167, %v2389, -inf
        %2401 = vmax.xlane.f32.xlu0 %v2400
        %v2402 = vpop.xlane.xlu0 %2401
        %v2403 = vsel %vm2167, %v2394, -inf
        %2404 = vmax.xlane.f32.xlu0 %v2403
        %v2405 = vpop.xlane.xlu0 %2404
        %v2406 = vsub.f32 %v2384, %v2399
        %v2407 = vsub.f32 %v2389, %v2402
        %v2408 = vsub.f32 %v2394, %v2405
        %v2409 = vmul.f32 %v2406, 1.442695
        %v2410 = vpow.pop %v2409
        %v2411 = vmul.f32 %v2407, 1.442695
        %v2412 = vpow.pop %v2411
        %v2413 = vmul.f32 %v2408, 1.442695
        %v2414 = vpow.pop %v2413
        %v2415 = vsel %vm2167, %v2410, 0.0
        %2416 = vadd.xlane.f32.xlu0 %v2415
        %v2417 = vpop.xlane.xlu0 %2416
        %v2418 = vsel %vm2167, %v2412, 0.0
        %2419 = vadd.xlane.f32.xlu0 %v2418
        %v2420 = vpop.xlane.xlu0 %2419
        %v2421 = vsel %vm2167, %v2414, 0.0
        %2422 = vadd.xlane.f32.xlu0 %v2421
        %v2423 = vpop.xlane.xlu0 %2422
        %v2424 = vrcp.pop %v2417
        %v2425 = vmul.f32 %v2410, %v2424
        %v2426 = vrcp.pop %v2420
        %v2427 = vmul.f32 %v2412, %v2426
        %v2428 = vrcp.pop %v2423
        %v2429 = vmul.f32 %v2414, %v2428
        %2433 = vrot.lane.b32.xlu0 %v2036, 64
        %v2434 = vpop.permute.xlu0 %2433
        %2435 = vrot.lane.b32.xlu0 %v2040, 64
        %v2436 = vpop.permute.xlu0 %2435
        %2437 = vrot.lane.b32.xlu0 %v2046, 64
        %v2438 = vpop.permute.xlu0 %2437
        %v2443 = vsel %vm2167, %v2425, 0
        %v2446 = vsel %vm2167, %v2427, 0
        %v2449 = vsel %vm2167, %v2429, 0
        %2451 = vmatprep.subr.mxu0 0.0
        %2452 = vmatpush1.msra.mxu0 0.0
        %2453 = vmatprep.subr.mxu0 0.0
        %2454 = vmatpush1.msra.mxu0 0.0
        %2455 = vmatprep.subr.mxu0 0.0
        %2456 = vmatpush1.msra.mxu0 0.0
        %2457 = vmatprep.subr.mxu0 0.0
        %2458 = vmatpush1.msra.mxu0 0.0
        %2459 = vmatprep.subr.mxu0 0.0
        %2460 = vmatpush1.msra.mxu0 0.0
        %2461 = vmatprep.subr.mxu0 0.0
        %2462 = vmatpush1.msra.mxu0 0.0
        %2463 = vmatprep.subr.mxu0 0.0
        %2464 = vmatpush1.msra.mxu0 0.0
        %2465 = vmatprep.subr.mxu0 0.0
        %2466 = vmatpush1.msra.mxu0 0.0
        %2467 = vmatprep.subr.mxu0 0.0
        %2468 = vmatpush1.msra.mxu0 0.0
        %2469 = vmatprep.subr.mxu0 0.0
        %2470 = vmatpush1.msra.mxu0 0.0
        %2471 = vmatprep.subr.mxu0 0.0
        %2472 = vmatpush1.msra.mxu0 0.0
        %2473 = vmatprep.subr.mxu0 0.0
        %2474 = vmatpush1.msra.mxu0 0.0
        %2475 = vmatprep.subr.mxu0 0.0
        %2476 = vmatpush1.msra.mxu0 0.0
        %2477 = vmatprep.subr.mxu0 0.0
        %2478 = vmatpush1.msra.mxu0 %v2438
        %2479 = vmatprep.subr.mxu0 0.0
        %2480 = vmatpush1.msra.mxu0 %v2436
        %2481 = vmatprep.subr.mxu0 0.0
        %2482 = vmatpush1.msra.mxu0 %v2434
        %2483 = vmatprep.subr.mxu0 0.0
        %2484 = vmatpush2.msra.mxu0 0.0
        %2485 = vmatprep.subr.mxu0 0.0
        %2486 = vmatpush2.msra.mxu0 0.0
        %2487 = vmatprep.subr.mxu0 0.0
        %2488 = vmatpush2.msra.mxu0 0.0
        %2489 = vmatprep.subr.mxu0 0.0
        %2490 = vmatpush2.msra.mxu0 0.0
        %2491 = vmatprep.subr.mxu0 0.0
        %2492 = vmatpush2.msra.mxu0 0.0
        %2493 = vmatprep.subr.mxu0 0.0
        %2494 = vmatpush2.msra.mxu0 0.0
        %2495 = vmatprep.subr.mxu0 0.0
        %2496 = vmatpush2.msra.mxu0 0.0
        %2497 = vmatprep.subr.mxu0 0.0
        %2498 = vmatpush2.msra.mxu0 0.0
        %2499 = vmatprep.subr.mxu0 0.0
        %2500 = vmatpush2.msra.mxu0 0.0
        %2501 = vmatprep.subr.mxu0 0.0
        %2502 = vmatpush2.msra.mxu0 0.0
        %2503 = vmatprep.subr.mxu0 0.0
        %2504 = vmatpush2.msra.mxu0 0.0
        %2505 = vmatprep.subr.mxu0 0.0
        %2506 = vmatpush2.msra.mxu0 0.0
        %2507 = vmatprep.subr.mxu0 0.0
        %2508 = vmatpush2.msra.mxu0 0.0
        %2509 = vmatprep.subr.mxu0 0.0
        %2510 = vmatpush2.msra.mxu0 0.0
        %2511 = vmatprep.subr.mxu0 0.0
        %2512 = vmatpush2.msra.mxu0 0.0
        %2513 = vmatprep.subr.mxu0 0.0
        %2514 = vmatpush2.msra.mxu0 0.0
        %2515 = vmatprep.mubr.f32.mxu0 0.0
        %2516 = vmatmul.mubr.f32.gmra.mxu0 %v2443
        %v2517 = vpop.f32.mrf.mxu0
        %v2518 = vadd.f32 0.0, %v2517
        %v2519 = vpop.f32.mrf.mxu0
        %2520 = vmatprep.mubr.f32.mxu0 0.0
        %2521 = vmatmul.mubr.f32.gmra.mxu0 %v2446
        %v2522 = vpop.f32.mrf.mxu0
        %v2523 = vadd.f32 0.0, %v2522
        %v2524 = vpop.f32.mrf.mxu0
        %2525 = vmatprep.mubr.f32.mxu0 0.0
        %2526 = vmatmul.mubr.f32.gmra.mxu0 %v2449
        %v2527 = vpop.f32.mrf.mxu0
        %v2528 = vadd.f32 0.0, %v2527
        %v2529 = vpop.f32.mrf.mxu0
        %2530 = vdwg.mxu0
        %2534 = vrot.lane.b32.xlu0 %v2518, 64
        %v2535 = vpop.permute.xlu0 %2534
        %2536 = vrot.lane.b32.xlu0 %v2523, 64
        %v2537 = vpop.permute.xlu0 %2536
        %2538 = vrot.lane.b32.xlu0 %v2528, 64
        %v2539 = vpop.permute.xlu0 %2538
        %vm2543 = vcmask 1048064
        %2544 = vst.msk [vmem:[%s469] sm:$0xff] %vm2543, %v2535
        %2545 = vst.msk [vmem:[%s469 + $0x10] sm:$0xff] %vm2543, %v2537
        %2546 = vst.msk [vmem:[%s469 + $0x20] sm:$0xff] %vm2543, %v2539
        %v2548 = vsel %vm2068, %v2053, 0
        %v2551 = vsel %vm2068, %v2055, 0
        %v2554 = vsel %vm2068, %v2057, 0
        %v2557 = vsel %vm2068, %v1518, 0
        %v2560 = vsel %vm2068, %v1522, 0
        %v2563 = vsel %vm2068, %v1528, 0
        %2565 = vmatprep.subr.mxu0 0.0
        %2566 = vmatpush1.xpose.msra.mxu0 0.0
        %2567 = vmatprep.subr.mxu0 0.0
        %2568 = vmatpush1.xpose.msra.mxu0 0.0
        %2569 = vmatprep.subr.mxu0 0.0
        %2570 = vmatpush1.xpose.msra.mxu0 0.0
        %2571 = vmatprep.subr.mxu0 0.0
        %2572 = vmatpush1.xpose.msra.mxu0 0.0
        %2573 = vmatprep.subr.mxu0 0.0
        %2574 = vmatpush1.xpose.msra.mxu0 0.0
        %2575 = vmatprep.subr.mxu0 0.0
        %2576 = vmatpush1.xpose.msra.mxu0 0.0
        %2577 = vmatprep.subr.mxu0 0.0
        %2578 = vmatpush1.xpose.msra.mxu0 0.0
        %2579 = vmatprep.subr.mxu0 0.0
        %2580 = vmatpush1.xpose.msra.mxu0 0.0
        %2581 = vmatprep.subr.mxu0 0.0
        %2582 = vmatpush1.xpose.msra.mxu0 0.0
        %2583 = vmatprep.subr.mxu0 0.0
        %2584 = vmatpush1.xpose.msra.mxu0 0.0
        %2585 = vmatprep.subr.mxu0 0.0
        %2586 = vmatpush1.xpose.msra.mxu0 0.0
        %2587 = vmatprep.subr.mxu0 0.0
        %2588 = vmatpush1.xpose.msra.mxu0 0.0
        %2589 = vmatprep.subr.mxu0 0.0
        %2590 = vmatpush1.xpose.msra.mxu0 0.0
        %2591 = vmatprep.subr.mxu0 0.0
        %2592 = vmatpush1.xpose.msra.mxu0 %v2563
        %2593 = vmatprep.subr.mxu0 0.0
        %2594 = vmatpush1.xpose.msra.mxu0 %v2560
        %2595 = vmatprep.subr.mxu0 0.0
        %2596 = vmatpush1.xpose.msra.mxu0 %v2557
        %2597 = vmatprep.subr.mxu0 0.0
        %2598 = vmatpush2.xpose.msra.mxu0 0.0
        %2599 = vmatprep.subr.mxu0 0.0
        %2600 = vmatpush2.xpose.msra.mxu0 0.0
        %2601 = vmatprep.subr.mxu0 0.0
        %2602 = vmatpush2.xpose.msra.mxu0 0.0
        %2603 = vmatprep.subr.mxu0 0.0
        %2604 = vmatpush2.xpose.msra.mxu0 0.0
        %2605 = vmatprep.subr.mxu0 0.0
        %2606 = vmatpush2.xpose.msra.mxu0 0.0
        %2607 = vmatprep.subr.mxu0 0.0
        %2608 = vmatpush2.xpose.msra.mxu0 0.0
        %2609 = vmatprep.subr.mxu0 0.0
        %2610 = vmatpush2.xpose.msra.mxu0 0.0
        %2611 = vmatprep.subr.mxu0 0.0
        %2612 = vmatpush2.xpose.msra.mxu0 0.0
        %2613 = vmatprep.subr.mxu0 0.0
        %2614 = vmatpush2.xpose.msra.mxu0 0.0
        %2615 = vmatprep.subr.mxu0 0.0
        %2616 = vmatpush2.xpose.msra.mxu0 0.0
        %2617 = vmatprep.subr.mxu0 0.0
        %2618 = vmatpush2.xpose.msra.mxu0 0.0
        %2619 = vmatprep.subr.mxu0 0.0
        %2620 = vmatpush2.xpose.msra.mxu0 0.0
        %2621 = vmatprep.subr.mxu0 0.0
        %2622 = vmatpush2.xpose.msra.mxu0 0.0
        %2623 = vmatprep.subr.mxu0 0.0
        %2624 = vmatpush2.xpose.msra.mxu0 0.0
        %2625 = vmatprep.subr.mxu0 0.0
        %2626 = vmatpush2.xpose.msra.mxu0 0.0
        %2627 = vmatprep.subr.mxu0 0.0
        %2628 = vmatpush2.xpose.msra.mxu0 0.0
        %2629 = vmatprep.mubr.f32.mxu0 0.0
        %2630 = vmatmul.mubr.f32.gmra.mxu0 %v2548
        %v2631 = vpop.f32.mrf.mxu0
        %v2632 = vadd.f32 %v2065, %v2631
        %v2633 = vpop.f32.mrf.mxu0
        %2634 = vmatprep.mubr.f32.mxu0 0.0
        %2635 = vmatmul.mubr.f32.gmra.mxu0 %v2551
        %v2636 = vpop.f32.mrf.mxu0
        %v2637 = vadd.f32 %v2066, %v2636
        %v2638 = vpop.f32.mrf.mxu0
        %2639 = vmatprep.mubr.f32.mxu0 0.0
        %2640 = vmatmul.mubr.f32.gmra.mxu0 %v2554
        %v2641 = vpop.f32.mrf.mxu0
        %v2642 = vadd.f32 %v2067, %v2641
        %v2643 = vpop.f32.mrf.mxu0
        %2644 = vdwg.mxu0
        %v2645 = vsel %vm2167, %v2632, -inf
        %2646 = vmax.xlane.f32.xlu0 %v2645
        %v2647 = vpop.xlane.xlu0 %2646
        %v2648 = vsel %vm2167, %v2637, -inf
        %2649 = vmax.xlane.f32.xlu0 %v2648
        %v2650 = vpop.xlane.xlu0 %2649
        %v2651 = vsel %vm2167, %v2642, -inf
        %2652 = vmax.xlane.f32.xlu0 %v2651
        %v2653 = vpop.xlane.xlu0 %2652
        %v2654 = vsub.f32 %v2632, %v2647
        %v2655 = vsub.f32 %v2637, %v2650
        %v2656 = vsub.f32 %v2642, %v2653
        %v2657 = vmul.f32 %v2654, 1.442695
        %v2658 = vpow.pop %v2657
        %v2659 = vmul.f32 %v2655, 1.442695
        %v2660 = vpow.pop %v2659
        %v2661 = vmul.f32 %v2656, 1.442695
        %v2662 = vpow.pop %v2661
        %v2663 = vsel %vm2167, %v2658, 0.0
        %2664 = vadd.xlane.f32.xlu0 %v2663
        %v2665 = vpop.xlane.xlu0 %2664
        %v2666 = vsel %vm2167, %v2660, 0.0
        %2667 = vadd.xlane.f32.xlu0 %v2666
        %v2668 = vpop.xlane.xlu0 %2667
        %v2669 = vsel %vm2167, %v2662, 0.0
        %2670 = vadd.xlane.f32.xlu0 %v2669
        %v2671 = vpop.xlane.xlu0 %2670
        %v2672 = vrcp.pop %v2665
        %v2673 = vmul.f32 %v2658, %v2672
        %v2674 = vrcp.pop %v2668
        %v2675 = vmul.f32 %v2660, %v2674
        %v2676 = vrcp.pop %v2671
        %v2677 = vmul.f32 %v2662, %v2676
        %v2679 = vsel %vm2167, %v2673, 0
        %v2682 = vsel %vm2167, %v2675, 0
        %v2685 = vsel %vm2167, %v2677, 0
        %2687 = vmatprep.subr.mxu0 0.0
        %2688 = vmatpush1.msra.mxu0 0.0
        %2689 = vmatprep.subr.mxu0 0.0
        %2690 = vmatpush1.msra.mxu0 0.0
        %2691 = vmatprep.subr.mxu0 0.0
        %2692 = vmatpush1.msra.mxu0 0.0
        %2693 = vmatprep.subr.mxu0 0.0
        %2694 = vmatpush1.msra.mxu0 0.0
        %2695 = vmatprep.subr.mxu0 0.0
        %2696 = vmatpush1.msra.mxu0 0.0
        %2697 = vmatprep.subr.mxu0 0.0
        %2698 = vmatpush1.msra.mxu0 0.0
        %2699 = vmatprep.subr.mxu0 0.0
        %2700 = vmatpush1.msra.mxu0 0.0
        %2701 = vmatprep.subr.mxu0 0.0
        %2702 = vmatpush1.msra.mxu0 0.0
        %2703 = vmatprep.subr.mxu0 0.0
        %2704 = vmatpush1.msra.mxu0 0.0
        %2705 = vmatprep.subr.mxu0 0.0
        %2706 = vmatpush1.msra.mxu0 0.0
        %2707 = vmatprep.subr.mxu0 0.0
        %2708 = vmatpush1.msra.mxu0 0.0
        %2709 = vmatprep.subr.mxu0 0.0
        %2710 = vmatpush1.msra.mxu0 0.0
        %2711 = vmatprep.subr.mxu0 0.0
        %2712 = vmatpush1.msra.mxu0 0.0
        %2713 = vmatprep.subr.mxu0 0.0
        %2714 = vmatpush1.msra.mxu0 %v2048
        %2715 = vmatprep.subr.mxu0 0.0
        %2716 = vmatpush1.msra.mxu0 %v2042
        %2717 = vmatprep.subr.mxu0 0.0
        %2718 = vmatpush1.msra.mxu0 %v2038
        %2719 = vmatprep.subr.mxu0 0.0
        %2720 = vmatpush2.msra.mxu0 0.0
        %2721 = vmatprep.subr.mxu0 0.0
        %2722 = vmatpush2.msra.mxu0 0.0
        %2723 = vmatprep.subr.mxu0 0.0
        %2724 = vmatpush2.msra.mxu0 0.0
        %2725 = vmatprep.subr.mxu0 0.0
        %2726 = vmatpush2.msra.mxu0 0.0
        %2727 = vmatprep.subr.mxu0 0.0
        %2728 = vmatpush2.msra.mxu0 0.0
        %2729 = vmatprep.subr.mxu0 0.0
        %2730 = vmatpush2.msra.mxu0 0.0
        %2731 = vmatprep.subr.mxu0 0.0
        %2732 = vmatpush2.msra.mxu0 0.0
        %2733 = vmatprep.subr.mxu0 0.0
        %2734 = vmatpush2.msra.mxu0 0.0
        %2735 = vmatprep.subr.mxu0 0.0
        %2736 = vmatpush2.msra.mxu0 0.0
        %2737 = vmatprep.subr.mxu0 0.0
        %2738 = vmatpush2.msra.mxu0 0.0
        %2739 = vmatprep.subr.mxu0 0.0
        %2740 = vmatpush2.msra.mxu0 0.0
        %2741 = vmatprep.subr.mxu0 0.0
        %2742 = vmatpush2.msra.mxu0 0.0
        %2743 = vmatprep.subr.mxu0 0.0
        %2744 = vmatpush2.msra.mxu0 0.0
        %2745 = vmatprep.subr.mxu0 0.0
        %2746 = vmatpush2.msra.mxu0 0.0
        %2747 = vmatprep.subr.mxu0 0.0
        %2748 = vmatpush2.msra.mxu0 0.0
        %2749 = vmatprep.subr.mxu0 0.0
        %2750 = vmatpush2.msra.mxu0 0.0
        %2751 = vmatprep.mubr.f32.mxu0 0.0
        %2752 = vmatmul.mubr.f32.gmra.mxu0 %v2679
        %v2753 = vpop.f32.mrf.mxu0
        %v2754 = vadd.f32 0.0, %v2753
        %v2755 = vpop.f32.mrf.mxu0
        %2756 = vmatprep.mubr.f32.mxu0 0.0
        %2757 = vmatmul.mubr.f32.gmra.mxu0 %v2682
        %v2758 = vpop.f32.mrf.mxu0
        %v2759 = vadd.f32 0.0, %v2758
        %v2760 = vpop.f32.mrf.mxu0
        %2761 = vmatprep.mubr.f32.mxu0 0.0
        %2762 = vmatmul.mubr.f32.gmra.mxu0 %v2685
        %v2763 = vpop.f32.mrf.mxu0
        %v2764 = vadd.f32 0.0, %v2763
        %v2765 = vpop.f32.mrf.mxu0
        %2766 = vdwg.mxu0
        %2767 = vst.msk [vmem:[%s469 + $0x8] sm:$0xff] %vm2068, %v2754
        %2768 = vst.msk [vmem:[%s469 + $0x18] sm:$0xff] %vm2068, %v2759
        %2769 = vst.msk [vmem:[%s469 + $0x28] sm:$0xff] %vm2068, %v2764
        %2770 = vrot.lane.b32.xlu0 %v2053, 64
        %v2771 = vpop.permute.xlu0 %2770
        %2772 = vrot.lane.b32.xlu0 %v2055, 64
        %v2773 = vpop.permute.xlu0 %2772
        %2774 = vrot.lane.b32.xlu0 %v2057, 64
        %v2775 = vpop.permute.xlu0 %2774
        %2776 = vrot.lane.b32.xlu0 %v1518, 64
        %v2777 = vpop.permute.xlu0 %2776
        %2778 = vrot.lane.b32.xlu0 %v1522, 64
        %v2779 = vpop.permute.xlu0 %2778
        %2780 = vrot.lane.b32.xlu0 %v1528, 64
        %v2781 = vpop.permute.xlu0 %2780
        %v2782 = vsel %vm2068, %v2771, 0
        %v2784 = vsel %vm2068, %v2773, 0
        %v2786 = vsel %vm2068, %v2775, 0
        %v2788 = vsel %vm2068, %v2777, 0
        %v2790 = vsel %vm2068, %v2779, 0
        %v2792 = vsel %vm2068, %v2781, 0
        %2794 = vmatprep.subr.mxu0 0.0
        %2795 = vmatpush1.xpose.msra.mxu0 0.0
        %2796 = vmatprep.subr.mxu0 0.0
        %2797 = vmatpush1.xpose.msra.mxu0 0.0
        %2798 = vmatprep.subr.mxu0 0.0
        %2799 = vmatpush1.xpose.msra.mxu0 0.0
        %2800 = vmatprep.subr.mxu0 0.0
        %2801 = vmatpush1.xpose.msra.mxu0 0.0
        %2802 = vmatprep.subr.mxu0 0.0
        %2803 = vmatpush1.xpose.msra.mxu0 0.0
        %2804 = vmatprep.subr.mxu0 0.0
        %2805 = vmatpush1.xpose.msra.mxu0 0.0
        %2806 = vmatprep.subr.mxu0 0.0
        %2807 = vmatpush1.xpose.msra.mxu0 0.0
        %2808 = vmatprep.subr.mxu0 0.0
        %2809 = vmatpush1.xpose.msra.mxu0 0.0
        %2810 = vmatprep.subr.mxu0 0.0
        %2811 = vmatpush1.xpose.msra.mxu0 0.0
        %2812 = vmatprep.subr.mxu0 0.0
        %2813 = vmatpush1.xpose.msra.mxu0 0.0
        %2814 = vmatprep.subr.mxu0 0.0
        %2815 = vmatpush1.xpose.msra.mxu0 0.0
        %2816 = vmatprep.subr.mxu0 0.0
        %2817 = vmatpush1.xpose.msra.mxu0 0.0
        %2818 = vmatprep.subr.mxu0 0.0
        %2819 = vmatpush1.xpose.msra.mxu0 0.0
        %2820 = vmatprep.subr.mxu0 0.0
        %2821 = vmatpush1.xpose.msra.mxu0 %v2792
        %2822 = vmatprep.subr.mxu0 0.0
        %2823 = vmatpush1.xpose.msra.mxu0 %v2790
        %2824 = vmatprep.subr.mxu0 0.0
        %2825 = vmatpush1.xpose.msra.mxu0 %v2788
        %2826 = vmatprep.subr.mxu0 0.0
        %2827 = vmatpush2.xpose.msra.mxu0 0.0
        %2828 = vmatprep.subr.mxu0 0.0
        %2829 = vmatpush2.xpose.msra.mxu0 0.0
        %2830 = vmatprep.subr.mxu0 0.0
        %2831 = vmatpush2.xpose.msra.mxu0 0.0
        %2832 = vmatprep.subr.mxu0 0.0
        %2833 = vmatpush2.xpose.msra.mxu0 0.0
        %2834 = vmatprep.subr.mxu0 0.0
        %2835 = vmatpush2.xpose.msra.mxu0 0.0
        %2836 = vmatprep.subr.mxu0 0.0
        %2837 = vmatpush2.xpose.msra.mxu0 0.0
        %2838 = vmatprep.subr.mxu0 0.0
        %2839 = vmatpush2.xpose.msra.mxu0 0.0
        %2840 = vmatprep.subr.mxu0 0.0
        %2841 = vmatpush2.xpose.msra.mxu0 0.0
        %2842 = vmatprep.subr.mxu0 0.0
        %2843 = vmatpush2.xpose.msra.mxu0 0.0
        %2844 = vmatprep.subr.mxu0 0.0
        %2845 = vmatpush2.xpose.msra.mxu0 0.0
        %2846 = vmatprep.subr.mxu0 0.0
        %2847 = vmatpush2.xpose.msra.mxu0 0.0
        %2848 = vmatprep.subr.mxu0 0.0
        %2849 = vmatpush2.xpose.msra.mxu0 0.0
        %2850 = vmatprep.subr.mxu0 0.0
        %2851 = vmatpush2.xpose.msra.mxu0 0.0
        %2852 = vmatprep.subr.mxu0 0.0
        %2853 = vmatpush2.xpose.msra.mxu0 0.0
        %2854 = vmatprep.subr.mxu0 0.0
        %2855 = vmatpush2.xpose.msra.mxu0 0.0
        %2856 = vmatprep.subr.mxu0 0.0
        %2857 = vmatpush2.xpose.msra.mxu0 0.0
        %2858 = vmatprep.mubr.f32.mxu0 0.0
        %2859 = vmatmul.mubr.f32.gmra.mxu0 %v2782
        %v2860 = vpop.f32.mrf.mxu0
        %v2861 = vadd.f32 %v2065, %v2860
        %v2862 = vpop.f32.mrf.mxu0
        %2863 = vmatprep.mubr.f32.mxu0 0.0
        %2864 = vmatmul.mubr.f32.gmra.mxu0 %v2784
        %v2865 = vpop.f32.mrf.mxu0
        %v2866 = vadd.f32 %v2066, %v2865
        %v2867 = vpop.f32.mrf.mxu0
        %2868 = vmatprep.mubr.f32.mxu0 0.0
        %2869 = vmatmul.mubr.f32.gmra.mxu0 %v2786
        %v2870 = vpop.f32.mrf.mxu0
        %v2871 = vadd.f32 %v2067, %v2870
        %v2872 = vpop.f32.mrf.mxu0
        %2873 = vdwg.mxu0
        %v2874 = vsel %vm2167, %v2861, -inf
        %2875 = vmax.xlane.f32.xlu0 %v2874
        %v2876 = vpop.xlane.xlu0 %2875
        %v2877 = vsel %vm2167, %v2866, -inf
        %2878 = vmax.xlane.f32.xlu0 %v2877
        %v2879 = vpop.xlane.xlu0 %2878
        %v2880 = vsel %vm2167, %v2871, -inf
        %2881 = vmax.xlane.f32.xlu0 %v2880
        %v2882 = vpop.xlane.xlu0 %2881
        %v2883 = vsub.f32 %v2861, %v2876
        %v2884 = vsub.f32 %v2866, %v2879
        %v2885 = vsub.f32 %v2871, %v2882
        %v2886 = vmul.f32 %v2883, 1.442695
        %v2887 = vpow.pop %v2886
        %v2888 = vmul.f32 %v2884, 1.442695
        %v2889 = vpow.pop %v2888
        %v2890 = vmul.f32 %v2885, 1.442695
        %v2891 = vpow.pop %v2890
        %v2892 = vsel %vm2167, %v2887, 0.0
        %2893 = vadd.xlane.f32.xlu0 %v2892
        %v2894 = vpop.xlane.xlu0 %2893
        %v2895 = vsel %vm2167, %v2889, 0.0
        %2896 = vadd.xlane.f32.xlu0 %v2895
        %v2897 = vpop.xlane.xlu0 %2896
        %v2898 = vsel %vm2167, %v2891, 0.0
        %2899 = vadd.xlane.f32.xlu0 %v2898
        %v2900 = vpop.xlane.xlu0 %2899
        %v2901 = vrcp.pop %v2894
        %v2902 = vmul.f32 %v2887, %v2901
        %v2903 = vrcp.pop %v2897
        %v2904 = vmul.f32 %v2889, %v2903
        %v2905 = vrcp.pop %v2900
        %v2906 = vmul.f32 %v2891, %v2905
        %2910 = vrot.lane.b32.xlu0 %v2038, 64
        %v2911 = vpop.permute.xlu0 %2910
        %2912 = vrot.lane.b32.xlu0 %v2042, 64
        %v2913 = vpop.permute.xlu0 %2912
        %2914 = vrot.lane.b32.xlu0 %v2048, 64
        %v2915 = vpop.permute.xlu0 %2914
        %v2920 = vsel %vm2167, %v2902, 0
        %v2923 = vsel %vm2167, %v2904, 0
        %v2926 = vsel %vm2167, %v2906, 0
        %2928 = vmatprep.subr.mxu0 0.0
        %2929 = vmatpush1.msra.mxu0 0.0
        %2930 = vmatprep.subr.mxu0 0.0
        %2931 = vmatpush1.msra.mxu0 0.0
        %2932 = vmatprep.subr.mxu0 0.0
        %2933 = vmatpush1.msra.mxu0 0.0
        %2934 = vmatprep.subr.mxu0 0.0
        %2935 = vmatpush1.msra.mxu0 0.0
        %2936 = vmatprep.subr.mxu0 0.0
        %2937 = vmatpush1.msra.mxu0 0.0
        %2938 = vmatprep.subr.mxu0 0.0
        %2939 = vmatpush1.msra.mxu0 0.0
        %2940 = vmatprep.subr.mxu0 0.0
        %2941 = vmatpush1.msra.mxu0 0.0
        %2942 = vmatprep.subr.mxu0 0.0
        %2943 = vmatpush1.msra.mxu0 0.0
        %2944 = vmatprep.subr.mxu0 0.0
        %2945 = vmatpush1.msra.mxu0 0.0
        %2946 = vmatprep.subr.mxu0 0.0
        %2947 = vmatpush1.msra.mxu0 0.0
        %2948 = vmatprep.subr.mxu0 0.0
        %2949 = vmatpush1.msra.mxu0 0.0
        %2950 = vmatprep.subr.mxu0 0.0
        %2951 = vmatpush1.msra.mxu0 0.0
        %2952 = vmatprep.subr.mxu0 0.0
        %2953 = vmatpush1.msra.mxu0 0.0
        %2954 = vmatprep.subr.mxu0 0.0
        %2955 = vmatpush1.msra.mxu0 %v2915
        %2956 = vmatprep.subr.mxu0 0.0
        %2957 = vmatpush1.msra.mxu0 %v2913
        %2958 = vmatprep.subr.mxu0 0.0
        %2959 = vmatpush1.msra.mxu0 %v2911
        %2960 = vmatprep.subr.mxu0 0.0
        %2961 = vmatpush2.msra.mxu0 0.0
        %2962 = vmatprep.subr.mxu0 0.0
        %2963 = vmatpush2.msra.mxu0 0.0
        %2964 = vmatprep.subr.mxu0 0.0
        %2965 = vmatpush2.msra.mxu0 0.0
        %2966 = vmatprep.subr.mxu0 0.0
        %2967 = vmatpush2.msra.mxu0 0.0
        %2968 = vmatprep.subr.mxu0 0.0
        %2969 = vmatpush2.msra.mxu0 0.0
        %2970 = vmatprep.subr.mxu0 0.0
        %2971 = vmatpush2.msra.mxu0 0.0
        %2972 = vmatprep.subr.mxu0 0.0
        %2973 = vmatpush2.msra.mxu0 0.0
        %2974 = vmatprep.subr.mxu0 0.0
        %2975 = vmatpush2.msra.mxu0 0.0
        %2976 = vmatprep.subr.mxu0 0.0
        %2977 = vmatpush2.msra.mxu0 0.0
        %2978 = vmatprep.subr.mxu0 0.0
        %2979 = vmatpush2.msra.mxu0 0.0
        %2980 = vmatprep.subr.mxu0 0.0
        %2981 = vmatpush2.msra.mxu0 0.0
        %2982 = vmatprep.subr.mxu0 0.0
        %2983 = vmatpush2.msra.mxu0 0.0
        %2984 = vmatprep.subr.mxu0 0.0
        %2985 = vmatpush2.msra.mxu0 0.0
        %2986 = vmatprep.subr.mxu0 0.0
        %2987 = vmatpush2.msra.mxu0 0.0
        %2988 = vmatprep.subr.mxu0 0.0
        %2989 = vmatpush2.msra.mxu0 0.0
        %2990 = vmatprep.subr.mxu0 0.0
        %2991 = vmatpush2.msra.mxu0 0.0
        %2992 = vmatprep.mubr.f32.mxu0 0.0
        %2993 = vmatmul.mubr.f32.gmra.mxu0 %v2920
        %v2994 = vpop.f32.mrf.mxu0
        %v2995 = vadd.f32 0.0, %v2994
        %v2996 = vpop.f32.mrf.mxu0
        %2997 = vmatprep.mubr.f32.mxu0 0.0
        %2998 = vmatmul.mubr.f32.gmra.mxu0 %v2923
        %v2999 = vpop.f32.mrf.mxu0
        %v3000 = vadd.f32 0.0, %v2999
        %v3001 = vpop.f32.mrf.mxu0
        %3002 = vmatprep.mubr.f32.mxu0 0.0
        %3003 = vmatmul.mubr.f32.gmra.mxu0 %v2926
        %v3004 = vpop.f32.mrf.mxu0
        %v3005 = vadd.f32 0.0, %v3004
        %v3006 = vpop.f32.mrf.mxu0
        %3007 = vdwg.mxu0
        %3011 = vrot.lane.b32.xlu0 %v2995, 64
        %v3012 = vpop.permute.xlu0 %3011
        %3013 = vrot.lane.b32.xlu0 %v3000, 64
        %v3014 = vpop.permute.xlu0 %3013
        %3015 = vrot.lane.b32.xlu0 %v3005, 64
        %v3016 = vpop.permute.xlu0 %3015
        %3020 = vst.msk [vmem:[%s469 + $0x8] sm:$0xff] %vm2543, %v3012
        %3021 = vst.msk [vmem:[%s469 + $0x18] sm:$0xff] %vm2543, %v3014
        %3022 = vst.msk [vmem:[%s469 + $0x28] sm:$0xff] %vm2543, %v3016
        %s3023 = sand.u32 %s228, 1
        %s3024 = scalar_lea.sflag [#allocation4], %s3023
        %s3025 = sand.u32 %s228, 1
        %s3026 = smul.addr %s3025, 48
        %s3027 = scalar_lea.vmem [#allocation14], %s3026
        // Predicated region
        $region77: #{tpu_custom_call.1} parent=47 // pred_check
          %p3028 = pneg %p238
        $region78: #{tpu_custom_call.1} parent=47 // pred_check_branch
          %3030 = sbr.rel (%p3028) target = $region80
        $region79: #{tpu_custom_call.1} parent=47 // pred_region
          %s3031 = smul.u32 2, %s33
          %s3033 = ssub.s32 768, 768
          %3034 = vsyncadd %s3024, %s3033
          %s3035 = smul.addr %s34, 12
          %s3036 = sadd.s32 %s3031, %s3035
          %s3037 = smul.addr %s3036, 128
          %s3038 = scalar_lea.hbm %s7, %s3037
          %s3039 = sshll.u32 %s3027, 4
          %s3040 = int_to_ptr.vmem [resolvable:$true] %s3039
          %3045 = dma.vmem_to_hbm [thread:$0]  %s3040, 768, %s3038, %s3024, 256, 512, 16
        $region80: #{tpu_custom_call.1} parent=47 // pred_fallthru
          _
      $region48: #{tpu_custom_call.1} parent=5 // pred_fallthru
        _
      %p3046 = scmp.le.s32.totalorder 2, %s24
      // Predicated region
      $region81: #{tpu_custom_call.1} parent=5 // pred_check
        %p3047 = pneg %p3046
      $region82: #{tpu_custom_call.1} parent=5 // pred_check_branch
        %3049 = sbr.rel (%p3047) target = $region84
      $region83: #{tpu_custom_call.1} parent=5 // pred_region
        %s3050 = ssub.s32 %s24, 2
        // Predicated region
        $region85: #{tpu_custom_call.1} parent=83 // pred_check
          %p3051 = pneg %p244
        $region86: #{tpu_custom_call.1} parent=83 // pred_check_branch
          %3053 = sbr.rel (%p3051) target = $region88
        $region87: #{tpu_custom_call.1} parent=83 // pred_region
          %s3054 = sand.u32 %s229, 1
          %s3055 = scalar_lea.sflag [#allocation4], %s3054
          %s3056 = sand.u32 %s229, 1
          %s3057 = smul.addr %s3056, 48
          %s3058 = scalar_lea.vmem [#allocation14], %s3057
          %3059 = dma.done %s3055, 768
        $region88: #{tpu_custom_call.1} parent=83 // pred_fallthru
          _
      $region84: #{tpu_custom_call.1} parent=5 // pred_fallthru
        _
    $region6: #{tpu_custom_call.1} parent=1 // loop_footer
      %s28 = sadd.s32 1, %s24
    $region7: #{tpu_custom_call.1} parent=1 // loop_footer_branch
      %23 = sbr.rel target = $region3
    $region8: #{tpu_custom_call.1} parent=1 // loop_exit
      _
    %3060 = vsyncpa [#allocation3], 1
    %s3061 = scalar_lea.sflag [#allocation3], 1
    %3062 = vsyncpa %s3061, 1
    %3063 = vsyncpa [#allocation6], 1
    %3064 = vsyncpa [#allocation9], 1
    %s3065 = scalar_lea.sflag [#allocation9], 1
    %3066 = vsyncpa %s3065, 1
    %3067 = vsyncpa [#allocation12], 1
    %s3068 = scalar_lea.sflag [#allocation12], 1
    %3069 = vsyncpa %s3068, 1
    %3070 = vsyncpa [#allocation4], 1
    %s3071 = scalar_lea.sflag [#allocation4], 1
    %3072 = vsyncpa %s3071, 1

</llo_original>
